<compile_context>
chip_gen: v6e
topology: v6e:2x2x1
jax: 0.10.0
libtpu: 0.0.40
codegen_flags: <defaults>
</compile_context>

<pallas_src>
import jax
import jax.numpy as jnp
from jax.experimental import pallas as pl
from jax.experimental.pallas import tpu as pltpu

EPS = 1e-5
NEG_SLOPE = 0.1


# --------------------------------------------------------------------------
# Pass 1: one output-parity sub-convolution (as a matmul) + BN statistics.
# --------------------------------------------------------------------------
def _conv_stats_kernel(w_ref, p_ref, y_ref, sum_ref, sq_ref):
    """w_ref: (Cout, K) bf16, p_ref: (K, TM) bf16, y_ref: (Cout, TM) f32.

    sum_ref / sq_ref: (Cout, 1) f32 accumulators, resident across the grid
    (their block index is constant and the M axis is "arbitrary").
    """
    @pl.when(pl.program_id(0) == 0)
    def _init():
        sum_ref[...] = jnp.zeros_like(sum_ref)
        sq_ref[...] = jnp.zeros_like(sq_ref)

    y = jnp.dot(w_ref[...], p_ref[...], preferred_element_type=jnp.float32)
    y_ref[...] = y
    sum_ref[...] += jnp.sum(y, axis=1, keepdims=True)
    sq_ref[...] += jnp.sum(y * y, axis=1, keepdims=True)


# --------------------------------------------------------------------------
# Pass 2: BatchNorm affine (precomputed scale/shift) + LeakyReLU(0.1).
# --------------------------------------------------------------------------
def _bn_lrelu_kernel(y_ref, scale_ref, shift_ref, o_ref):
    z = y_ref[...] * scale_ref[...] + shift_ref[...]
    o_ref[...] = jnp.where(z >= 0, z, NEG_SLOPE * z)


def _round_up(v, m):
    return (v + m - 1) // m * m


def _pick_tile(mp):
    # Lane-dimension tile: multiple of 128, capped so the double-buffered
    # working set stays at a few hundred KiB on every TPU generation.
    return min(_round_up(mp, 128), 2048)


@jax.jit
def conv_transpose_net(x_ncdhw, w_pt, bias, gamma, beta):
    """Forward pass of ConvTransposeNet (training-mode BatchNorm).

    x_ncdhw: (N, Cin, D, H, W) f32
    w_pt:    (Cin, Cout, 3, 3, 3) f32  (PyTorch ConvTranspose3d weight layout)
    bias:    (Cout,)  -- unused: a conv bias is exactly cancelled by the
             training-mode BatchNorm that follows (mean absorbs it).
    gamma, beta: (Cout,) BatchNorm affine parameters.
    returns: (N, Cout, 2D-1, 2H-1, 2W-1) f32
    """
    del bias
    n, cin, d, h, w = x_ncdhw.shape
    cout = w_pt.shape[1]
    do, ho, wo = 2 * d - 1, 2 * h - 1, 2 * w - 1

    # Channel-major input + bf16 matmul operands (f32 accumulation in-kernel).
    x_cm = jnp.transpose(x_ncdhw, (1, 0, 2, 3, 4)).astype(jnp.bfloat16)  # (Cin,N,D,H,W)
    w16 = w_pt.astype(jnp.bfloat16)

    # ConvTranspose3d(k=3, s=2, p=1):  out[o] += x[i] * W[k]  where o = 2i-1+k.
    #   even o = 2j   -> single tap  (i=j,   k=1)
    #   odd  o = 2j+1 -> two taps    (i=j,   k=2), (i=j+1, k=0)
    def axis_taps(parity):
        return [(0, 1)] if parity == 0 else [(0, 2), (1, 0)]

    parities = [(pd, ph, pw) for pd in (0, 1) for ph in (0, 1) for pw in (0, 1)]

    # ------------------- pass 1: conv matmuls + statistics -------------------
    per_parity = []
    tot_sum = jnp.zeros((cout,), jnp.float32)
    tot_sq = jnp.zeros((cout,), jnp.float32)

    for (pd, ph, pw) in parities:
        dp = d if pd == 0 else d - 1
        hp = h if ph == 0 else h - 1
        wp = w if pw == 0 else w - 1
        mp = n * dp * hp * wp
        if mp == 0:
            per_parity.append(None)
            continue

        taps = [(td, kd, th, kh, tw, kw)
                for (td, kd) in axis_taps(pd)
                for (th, kh) in axis_taps(ph)
                for (tw, kw) in axis_taps(pw)]
        t = len(taps)
        kdim = t * cin

        # Patches: only the real taps, (taps*Cin, M) with M = (n, jd, jh, jw).
        p_slices = [x_cm[:, :, td:td + dp, th:th + hp, tw:tw + wp]
                    for (td, _, th, _, tw, _) in taps]          # each (Cin,N,dp,hp,wp)
        patches = jnp.stack(p_slices, axis=0).reshape(kdim, mp)

        # Matching weight matrix (Cout, taps*Cin), same (tap, ci) ordering.
        w_slices = [w16[:, :, kd, kh, kw] for (_, kd, _, kh, _, kw) in taps]  # (Cin,Cout)
        w_mat = jnp.transpose(jnp.stack(w_slices, axis=0), (2, 0, 1)).reshape(cout, kdim)

        tm = _pick_tile(mp)
        mp_pad = _round_up(mp, tm)
        if mp_pad != mp:
            # Zero columns contribute 0 to sum/sumsq and are sliced away below,
            # so they never bias the BatchNorm statistics.
            patches = jnp.pad(patches, ((0, 0), (0, mp_pad - mp)))
        n_tiles = mp_pad // tm

        y_p, s_p, q_p = pl.pallas_call(
            _conv_stats_kernel,
            out_shape=(
                jax.ShapeDtypeStruct((cout, mp_pad), jnp.float32),
                jax.ShapeDtypeStruct((cout, 1), jnp.float32),
                jax.ShapeDtypeStruct((cout, 1), jnp.float32),
            ),
            grid=(n_tiles,),
            in_specs=[
                pl.BlockSpec((cout, kdim), lambda i: (0, 0)),
                pl.BlockSpec((kdim, tm), lambda i: (0, i)),
            ],
            out_specs=(
                pl.BlockSpec((cout, tm), lambda i: (0, i)),
                pl.BlockSpec((cout, 1), lambda i: (0, 0)),
                pl.BlockSpec((cout, 1), lambda i: (0, 0)),
            ),
            compiler_params=pltpu.CompilerParams(
                # Resident sum/sumsq accumulators require a sequential M axis.
                dimension_semantics=("arbitrary",),
            ),
        )(w_mat, patches)

        per_parity.append((y_p, mp, mp_pad, tm, dp, hp, wp, pd, ph, pw))
        tot_sum = tot_sum + s_p[:, 0]
        tot_sq = tot_sq + q_p[:, 0]

    # -------- global BatchNorm statistics (training mode, biased var) --------
    m_total = jnp.float32(n * do * ho * wo)
    mean = tot_sum / m_total
    var = jnp.maximum(tot_sq / m_total - mean * mean, 0.0)
    inv_std = jax.lax.rsqrt(var + EPS)
    g32 = gamma.astype(jnp.float32)
    scale = (g32 * inv_std).reshape(cout, 1)
    shift = (beta.astype(jnp.float32) - mean * g32 * inv_std).reshape(cout, 1)

    # ---------------- pass 2: normalize + LeakyReLU + scatter ----------------
    out = jnp.zeros((n, cout, do, ho, wo), jnp.float32)
    for item in per_parity:
        if item is None:
            continue
        y_p, mp, mp_pad, tm, dp, hp, wp, pd, ph, pw = item
        n_tiles = mp_pad // tm

        z_p = pl.pallas_call(
            _bn_lrelu_kernel,
            out_shape=jax.ShapeDtypeStruct((cout, mp_pad), jnp.float32),
            grid=(n_tiles,),
            in_specs=[
                pl.BlockSpec((cout, tm), lambda i: (0, i)),
                pl.BlockSpec((cout, 1), lambda i: (0, 0)),
                pl.BlockSpec((cout, 1), lambda i: (0, 0)),
            ],
            out_specs=pl.BlockSpec((cout, tm), lambda i: (0, i)),
            compiler_params=pltpu.CompilerParams(
                # Independent tiles: let v7x's two TensorCores split the work.
                dimension_semantics=("parallel",),
            ),
        )(y_p, scale, shift)

        sub = z_p[:, :mp].reshape(cout, n, dp, hp, wp)
        sub = jnp.transpose(sub, (1, 0, 2, 3, 4))               # (N, Cout, dp, hp, wp)
        out = out.at[:, :, pd::2, ph::2, pw::2].set(sub)

    # TODO(synk): BatchNorm3d running_mean/running_var buffers are not updated
    # (only the training-mode forward activation is produced).
    return out


def init_params(key, in_ch, out_ch):
    """Deterministic parameter init (mirrors PyTorch default shapes)."""
    kw, kb = jax.random.split(key)
    fan = in_ch * 3 * 3 * 3
    bound = 1.0 / jnp.sqrt(jnp.float32(fan))
    w = jax.random.uniform(kw, (in_ch, out_ch, 3, 3, 3), jnp.float32, -bound, bound)
    b = jax.random.uniform(kb, (out_ch,), jnp.float32, -bound, bound)
    gamma = jnp.ones((out_ch,), jnp.float32)   # BatchNorm3d default weight
    beta = jnp.zeros((out_ch,), jnp.float32)   # BatchNorm3d default bias
    return w, b, gamma, beta


if __name__ == "__main__":
    key = jax.random.PRNGKey(0)
    k_x, k_p = jax.random.split(key)

    N, Cin, Cout = 2, 4, 8
    D = H = W = 8
    x = jax.random.normal(k_x, (N, Cin, D, H, W), jnp.float32)

    w, b, gamma, beta = init_params(k_p, Cin, Cout)

    out = conv_transpose_net(x, w, b, gamma, beta)
    out = jax.block_until_ready(out)

    expected_shape = (N, Cout, 2 * D - 1, 2 * H - 1, 2 * W - 1)
    assert out.shape == expected_shape, (out.shape, expected_shape)
    assert bool(jnp.all(jnp.isfinite(out)))

    print("KERNEL_OK")
</pallas_src>

<mosaic_0001>
module attributes {stable_mosaic.version = 11 : i64} {
  func.func @_conv_stats_kernel(%arg0: i32, %arg1: memref<8x4xbf16, #tpu.memory_space<vmem>>, %arg2: memref<4x1024xbf16, #tpu.memory_space<vmem>>, %arg3: memref<8x1024xf32, #tpu.memory_space<vmem>>, %arg4: memref<8x1xf32, #tpu.memory_space<vmem>>, %arg5: memref<8x1xf32, #tpu.memory_space<vmem>>) attributes {dimension_semantics = [#tpu.dimension_semantics<arbitrary>], iteration_bounds = array<i64: 1>, scalar_prefetch = 0 : i64, scratch_operands = 0 : i64, tpu.core_type = #tpu.core_type<tc>, window_params = [{pipeline_mode = #tpu.pipeline_mode<synchronous>, transform_indices = @transform_0, window_bounds = array<i64: 8, 4>}, {transform_indices = @transform_1, window_bounds = array<i64: 4, 1024>}, {transform_indices = @transform_2, window_bounds = array<i64: 8, 1024>}, {pipeline_mode = #tpu.pipeline_mode<synchronous>, transform_indices = @transform_3, window_bounds = array<i64: 8, 1>}, {pipeline_mode = #tpu.pipeline_mode<synchronous>, transform_indices = @transform_4, window_bounds = array<i64: 8, 1>}]} {
    %c0_i32 = arith.constant 0 : i32
    %0 = arith.cmpi eq, %arg0, %c0_i32 : i32
    %1 = arith.extui %0 : i1 to i32
    %c0_i32_0 = arith.constant 0 : i32
    %2 = arith.cmpi ne, %1, %c0_i32_0 : i32
    scf.if %2 {
      %cst_16 = arith.constant 0.000000e+00 : f32
      %18 = vector.broadcast %cst_16 : f32 to vector<8x1xf32>
      %c0_17 = arith.constant 0 : index
      %c0_18 = arith.constant 0 : index
      %19 = vector.load %arg4[%c0_17, %c0_18] : memref<8x1xf32, #tpu.memory_space<vmem>>, vector<8x1xf32>
      tpu.vector_store %arg4[%c0_17, %c0_18], %18 {strides = array<i32>} : memref<8x1xf32, #tpu.memory_space<vmem>>, vector<8x1xf32>,
      %cst_19 = arith.constant 0.000000e+00 : f32
      %20 = vector.broadcast %cst_19 : f32 to vector<8x1xf32>
      %c0_20 = arith.constant 0 : index
      %c0_21 = arith.constant 0 : index
      %21 = vector.load %arg5[%c0_20, %c0_21] : memref<8x1xf32, #tpu.memory_space<vmem>>, vector<8x1xf32>
      tpu.vector_store %arg5[%c0_20, %c0_21], %20 {strides = array<i32>} : memref<8x1xf32, #tpu.memory_space<vmem>>, vector<8x1xf32>,
    } else {
    }
    %c0 = arith.constant 0 : index
    %c0_1 = arith.constant 0 : index
    %3 = vector.load %arg1[%c0, %c0_1] : memref<8x4xbf16, #tpu.memory_space<vmem>>, vector<8x4xbf16>
    %c0_2 = arith.constant 0 : index
    %c0_3 = arith.constant 0 : index
    %4 = vector.load %arg2[%c0_2, %c0_3] : memref<4x1024xbf16, #tpu.memory_space<vmem>>, vector<4x1024xbf16>
    %cst = arith.constant dense<0.000000e+00> : vector<8x1024xf32>
    %5 = tpu.matmul %3, %4, %cst {dimension_numbers = #tpu.dot_dimension_numbers<[1], [0], [0], [1], [0, 0, 1, 1], [], []>} : vector<8x4xbf16>, vector<4x1024xbf16>, vector<8x1024xf32> -> vector<8x1024xf32>
    %c0_4 = arith.constant 0 : index
    %c0_5 = arith.constant 0 : index
    %6 = vector.load %arg3[%c0_4, %c0_5] : memref<8x1024xf32, #tpu.memory_space<vmem>>, vector<8x1024xf32>
    tpu.vector_store %arg3[%c0_4, %c0_5], %5 {strides = array<i32>} : memref<8x1024xf32, #tpu.memory_space<vmem>>, vector<8x1024xf32>,
    %c0_6 = arith.constant 0 : index
    %c0_7 = arith.constant 0 : index
    %7 = vector.load %arg4[%c0_6, %c0_7] : memref<8x1xf32, #tpu.memory_space<vmem>>, vector<8x1xf32>
    %cst_8 = arith.constant dense<0.000000e+00> : vector<8xf32>
    %8 = vector.multi_reduction <add>, %5, %cst_8 [1] : vector<8x1024xf32> to vector<8xf32>
    %9 = vector.shape_cast %8 : vector<8xf32> to vector<8x1xf32>
    %10 = arith.addf %7, %9 : vector<8x1xf32>
    %c0_9 = arith.constant 0 : index
    %c0_10 = arith.constant 0 : index
    %11 = vector.load %arg4[%c0_9, %c0_10] : memref<8x1xf32, #tpu.memory_space<vmem>>, vector<8x1xf32>
    tpu.vector_store %arg4[%c0_9, %c0_10], %10 {strides = array<i32>} : memref<8x1xf32, #tpu.memory_space<vmem>>, vector<8x1xf32>,
    %c0_11 = arith.constant 0 : index
    %c0_12 = arith.constant 0 : index
    %12 = vector.load %arg5[%c0_11, %c0_12] : memref<8x1xf32, #tpu.memory_space<vmem>>, vector<8x1xf32>
    %13 = arith.mulf %5, %5 : vector<8x1024xf32>
    %cst_13 = arith.constant dense<0.000000e+00> : vector<8xf32>
    %14 = vector.multi_reduction <add>, %13, %cst_13 [1] : vector<8x1024xf32> to vector<8xf32>
    %15 = vector.shape_cast %14 : vector<8xf32> to vector<8x1xf32>
    %16 = arith.addf %12, %15 : vector<8x1xf32>
    %c0_14 = arith.constant 0 : index
    %c0_15 = arith.constant 0 : index
    %17 = vector.load %arg5[%c0_14, %c0_15] : memref<8x1xf32, #tpu.memory_space<vmem>>, vector<8x1xf32>
    tpu.vector_store %arg5[%c0_14, %c0_15], %16 {strides = array<i32>} : memref<8x1xf32, #tpu.memory_space<vmem>>, vector<8x1xf32>,
    return
  }
  func.func @transform_0(%arg0: i32) -> (i32, i32) {
    %c0_i32 = arith.constant 0 : i32
    %c0_i32_0 = arith.constant 0 : i32
    %c0_i32_1 = arith.constant 0 : i32
    return %c0_i32, %c0_i32_0 : i32, i32
  }
  func.func @transform_1(%arg0: i32) -> (i32, i32) {
    %c0_i32 = arith.constant 0 : i32
    %c0_i32_0 = arith.constant 0 : i32
    return %c0_i32, %arg0 : i32, i32
  }
  func.func @transform_2(%arg0: i32) -> (i32, i32) {
    %c0_i32 = arith.constant 0 : i32
    %c0_i32_0 = arith.constant 0 : i32
    return %c0_i32, %arg0 : i32, i32
  }
  func.func @transform_3(%arg0: i32) -> (i32, i32) {
    %c0_i32 = arith.constant 0 : i32
    %c0_i32_0 = arith.constant 0 : i32
    %c0_i32_1 = arith.constant 0 : i32
    return %c0_i32, %c0_i32_0 : i32, i32
  }
  func.func @transform_4(%arg0: i32) -> (i32, i32) {
    %c0_i32 = arith.constant 0 : i32
    %c0_i32_0 = arith.constant 0 : i32
    %c0_i32_1 = arith.constant 0 : i32
    return %c0_i32, %c0_i32_0 : i32, i32
  }
}

module attributes {stable_mosaic.version = 11 : i64} {
  func.func @_conv_stats_kernel(%arg0: i32, %arg1: memref<8x32xbf16, #tpu.memory_space<vmem>>, %arg2: memref<32x768xbf16, #tpu.memory_space<vmem>>, %arg3: memref<8x768xf32, #tpu.memory_space<vmem>>, %arg4: memref<8x1xf32, #tpu.memory_space<vmem>>, %arg5: memref<8x1xf32, #tpu.memory_space<vmem>>) attributes {dimension_semantics = [#tpu.dimension_semantics<arbitrary>], iteration_bounds = array<i64: 1>, scalar_prefetch = 0 : i64, scratch_operands = 0 : i64, tpu.core_type = #tpu.core_type<tc>, window_params = [{pipeline_mode = #tpu.pipeline_mode<synchronous>, transform_indices = @transform_0, window_bounds = array<i64: 8, 32>}, {transform_indices = @transform_1, window_bounds = array<i64: 32, 768>}, {transform_indices = @transform_2, window_bounds = array<i64: 8, 768>}, {pipeline_mode = #tpu.pipeline_mode<synchronous>, transform_indices = @transform_3, window_bounds = array<i64: 8, 1>}, {pipeline_mode = #tpu.pipeline_mode<synchronous>, transform_indices = @transform_4, window_bounds = array<i64: 8, 1>}]} {
    %c0_i32 = arith.constant 0 : i32
    %0 = arith.cmpi eq, %arg0, %c0_i32 : i32
    %1 = arith.extui %0 : i1 to i32
    %c0_i32_0 = arith.constant 0 : i32
    %2 = arith.cmpi ne, %1, %c0_i32_0 : i32
    scf.if %2 {
      %cst_16 = arith.constant 0.000000e+00 : f32
      %18 = vector.broadcast %cst_16 : f32 to vector<8x1xf32>
      %c0_17 = arith.constant 0 : index
      %c0_18 = arith.constant 0 : index
      %19 = vector.load %arg4[%c0_17, %c0_18] : memref<8x1xf32, #tpu.memory_space<vmem>>, vector<8x1xf32>
      tpu.vector_store %arg4[%c0_17, %c0_18], %18 {strides = array<i32>} : memref<8x1xf32, #tpu.memory_space<vmem>>, vector<8x1xf32>,
      %cst_19 = arith.constant 0.000000e+00 : f32
      %20 = vector.broadcast %cst_19 : f32 to vector<8x1xf32>
      %c0_20 = arith.constant 0 : index
      %c0_21 = arith.constant 0 : index
      %21 = vector.load %arg5[%c0_20, %c0_21] : memref<8x1xf32, #tpu.memory_space<vmem>>, vector<8x1xf32>
      tpu.vector_store %arg5[%c0_20, %c0_21], %20 {strides = array<i32>} : memref<8x1xf32, #tpu.memory_space<vmem>>, vector<8x1xf32>,
    } else {
    }
    %c0 = arith.constant 0 : index
    %c0_1 = arith.constant 0 : index
    %3 = vector.load %arg1[%c0, %c0_1] : memref<8x32xbf16, #tpu.memory_space<vmem>>, vector<8x32xbf16>
    %c0_2 = arith.constant 0 : index
    %c0_3 = arith.constant 0 : index
    %4 = vector.load %arg2[%c0_2, %c0_3] : memref<32x768xbf16, #tpu.memory_space<vmem>>, vector<32x768xbf16>
    %cst = arith.constant dense<0.000000e+00> : vector<8x768xf32>
    %5 = tpu.matmul %3, %4, %cst {dimension_numbers = #tpu.dot_dimension_numbers<[1], [0], [0], [1], [0, 0, 1, 1], [], []>} : vector<8x32xbf16>, vector<32x768xbf16>, vector<8x768xf32> -> vector<8x768xf32>
    %c0_4 = arith.constant 0 : index
    %c0_5 = arith.constant 0 : index
    %6 = vector.load %arg3[%c0_4, %c0_5] : memref<8x768xf32, #tpu.memory_space<vmem>>, vector<8x768xf32>
    tpu.vector_store %arg3[%c0_4, %c0_5], %5 {strides = array<i32>} : memref<8x768xf32, #tpu.memory_space<vmem>>, vector<8x768xf32>,
    %c0_6 = arith.constant 0 : index
    %c0_7 = arith.constant 0 : index
    %7 = vector.load %arg4[%c0_6, %c0_7] : memref<8x1xf32, #tpu.memory_space<vmem>>, vector<8x1xf32>
    %cst_8 = arith.constant dense<0.000000e+00> : vector<8xf32>
    %8 = vector.multi_reduction <add>, %5, %cst_8 [1] : vector<8x768xf32> to vector<8xf32>
    %9 = vector.shape_cast %8 : vector<8xf32> to vector<8x1xf32>
    %10 = arith.addf %7, %9 : vector<8x1xf32>
    %c0_9 = arith.constant 0 : index
    %c0_10 = arith.constant 0 : index
    %11 = vector.load %arg4[%c0_9, %c0_10] : memref<8x1xf32, #tpu.memory_space<vmem>>, vector<8x1xf32>
    tpu.vector_store %arg4[%c0_9, %c0_10], %10 {strides = array<i32>} : memref<8x1xf32, #tpu.memory_space<vmem>>, vector<8x1xf32>,
    %c0_11 = arith.constant 0 : index
    %c0_12 = arith.constant 0 : index
    %12 = vector.load %arg5[%c0_11, %c0_12] : memref<8x1xf32, #tpu.memory_space<vmem>>, vector<8x1xf32>
    %13 = arith.mulf %5, %5 : vector<8x768xf32>
    %cst_13 = arith.constant dense<0.000000e+00> : vector<8xf32>
    %14 = vector.multi_reduction <add>, %13, %cst_13 [1] : vector<8x768xf32> to vector<8xf32>
    %15 = vector.shape_cast %14 : vector<8xf32> to vector<8x1xf32>
    %16 = arith.addf %12, %15 : vector<8x1xf32>
    %c0_14 = arith.constant 0 : index
    %c0_15 = arith.constant 0 : index
    %17 = vector.load %arg5[%c0_14, %c0_15] : memref<8x1xf32, #tpu.memory_space<vmem>>, vector<8x1xf32>
    tpu.vector_store %arg5[%c0_14, %c0_15], %16 {strides = array<i32>} : memref<8x1xf32, #tpu.memory_space<vmem>>, vector<8x1xf32>,
    return
  }
  func.func @transform_0(%arg0: i32) -> (i32, i32) {
    %c0_i32 = arith.constant 0 : i32
    %c0_i32_0 = arith.constant 0 : i32
    %c0_i32_1 = arith.constant 0 : i32
    return %c0_i32, %c0_i32_0 : i32, i32
  }
  func.func @transform_1(%arg0: i32) -> (i32, i32) {
    %c0_i32 = arith.constant 0 : i32
    %c0_i32_0 = arith.constant 0 : i32
    return %c0_i32, %arg0 : i32, i32
  }
  func.func @transform_2(%arg0: i32) -> (i32, i32) {
    %c0_i32 = arith.constant 0 : i32
    %c0_i32_0 = arith.constant 0 : i32
    return %c0_i32, %arg0 : i32, i32
  }
  func.func @transform_3(%arg0: i32) -> (i32, i32) {
    %c0_i32 = arith.constant 0 : i32
    %c0_i32_0 = arith.constant 0 : i32
    %c0_i32_1 = arith.constant 0 : i32
    return %c0_i32, %c0_i32_0 : i32, i32
  }
  func.func @transform_4(%arg0: i32) -> (i32, i32) {
    %c0_i32 = arith.constant 0 : i32
    %c0_i32_0 = arith.constant 0 : i32
    %c0_i32_1 = arith.constant 0 : i32
    return %c0_i32, %c0_i32_0 : i32, i32
  }
}

module attributes {stable_mosaic.version = 11 : i64} {
  func.func @_conv_stats_kernel(%arg0: i32, %arg1: memref<8x16xbf16, #tpu.memory_space<vmem>>, %arg2: memref<16x896xbf16, #tpu.memory_space<vmem>>, %arg3: memref<8x896xf32, #tpu.memory_space<vmem>>, %arg4: memref<8x1xf32, #tpu.memory_space<vmem>>, %arg5: memref<8x1xf32, #tpu.memory_space<vmem>>) attributes {dimension_semantics = [#tpu.dimension_semantics<arbitrary>], iteration_bounds = array<i64: 1>, scalar_prefetch = 0 : i64, scratch_operands = 0 : i64, tpu.core_type = #tpu.core_type<tc>, window_params = [{pipeline_mode = #tpu.pipeline_mode<synchronous>, transform_indices = @transform_0, window_bounds = array<i64: 8, 16>}, {transform_indices = @transform_1, window_bounds = array<i64: 16, 896>}, {transform_indices = @transform_2, window_bounds = array<i64: 8, 896>}, {pipeline_mode = #tpu.pipeline_mode<synchronous>, transform_indices = @transform_3, window_bounds = array<i64: 8, 1>}, {pipeline_mode = #tpu.pipeline_mode<synchronous>, transform_indices = @transform_4, window_bounds = array<i64: 8, 1>}]} {
    %c0_i32 = arith.constant 0 : i32
    %0 = arith.cmpi eq, %arg0, %c0_i32 : i32
    %1 = arith.extui %0 : i1 to i32
    %c0_i32_0 = arith.constant 0 : i32
    %2 = arith.cmpi ne, %1, %c0_i32_0 : i32
    scf.if %2 {
      %cst_16 = arith.constant 0.000000e+00 : f32
      %18 = vector.broadcast %cst_16 : f32 to vector<8x1xf32>
      %c0_17 = arith.constant 0 : index
      %c0_18 = arith.constant 0 : index
      %19 = vector.load %arg4[%c0_17, %c0_18] : memref<8x1xf32, #tpu.memory_space<vmem>>, vector<8x1xf32>
      tpu.vector_store %arg4[%c0_17, %c0_18], %18 {strides = array<i32>} : memref<8x1xf32, #tpu.memory_space<vmem>>, vector<8x1xf32>,
      %cst_19 = arith.constant 0.000000e+00 : f32
      %20 = vector.broadcast %cst_19 : f32 to vector<8x1xf32>
      %c0_20 = arith.constant 0 : index
      %c0_21 = arith.constant 0 : index
      %21 = vector.load %arg5[%c0_20, %c0_21] : memref<8x1xf32, #tpu.memory_space<vmem>>, vector<8x1xf32>
      tpu.vector_store %arg5[%c0_20, %c0_21], %20 {strides = array<i32>} : memref<8x1xf32, #tpu.memory_space<vmem>>, vector<8x1xf32>,
    } else {
    }
    %c0 = arith.constant 0 : index
    %c0_1 = arith.constant 0 : index
    %3 = vector.load %arg1[%c0, %c0_1] : memref<8x16xbf16, #tpu.memory_space<vmem>>, vector<8x16xbf16>
    %c0_2 = arith.constant 0 : index
    %c0_3 = arith.constant 0 : index
    %4 = vector.load %arg2[%c0_2, %c0_3] : memref<16x896xbf16, #tpu.memory_space<vmem>>, vector<16x896xbf16>
    %cst = arith.constant dense<0.000000e+00> : vector<8x896xf32>
    %5 = tpu.matmul %3, %4, %cst {dimension_numbers = #tpu.dot_dimension_numbers<[1], [0], [0], [1], [0, 0, 1, 1], [], []>} : vector<8x16xbf16>, vector<16x896xbf16>, vector<8x896xf32> -> vector<8x896xf32>
    %c0_4 = arith.constant 0 : index
    %c0_5 = arith.constant 0 : index
    %6 = vector.load %arg3[%c0_4, %c0_5] : memref<8x896xf32, #tpu.memory_space<vmem>>, vector<8x896xf32>
    tpu.vector_store %arg3[%c0_4, %c0_5], %5 {strides = array<i32>} : memref<8x896xf32, #tpu.memory_space<vmem>>, vector<8x896xf32>,
    %c0_6 = arith.constant 0 : index
    %c0_7 = arith.constant 0 : index
    %7 = vector.load %arg4[%c0_6, %c0_7] : memref<8x1xf32, #tpu.memory_space<vmem>>, vector<8x1xf32>
    %cst_8 = arith.constant dense<0.000000e+00> : vector<8xf32>
    %8 = vector.multi_reduction <add>, %5, %cst_8 [1] : vector<8x896xf32> to vector<8xf32>
    %9 = vector.shape_cast %8 : vector<8xf32> to vector<8x1xf32>
    %10 = arith.addf %7, %9 : vector<8x1xf32>
    %c0_9 = arith.constant 0 : index
    %c0_10 = arith.constant 0 : index
    %11 = vector.load %arg4[%c0_9, %c0_10] : memref<8x1xf32, #tpu.memory_space<vmem>>, vector<8x1xf32>
    tpu.vector_store %arg4[%c0_9, %c0_10], %10 {strides = array<i32>} : memref<8x1xf32, #tpu.memory_space<vmem>>, vector<8x1xf32>,
    %c0_11 = arith.constant 0 : index
    %c0_12 = arith.constant 0 : index
    %12 = vector.load %arg5[%c0_11, %c0_12] : memref<8x1xf32, #tpu.memory_space<vmem>>, vector<8x1xf32>
    %13 = arith.mulf %5, %5 : vector<8x896xf32>
    %cst_13 = arith.constant dense<0.000000e+00> : vector<8xf32>
    %14 = vector.multi_reduction <add>, %13, %cst_13 [1] : vector<8x896xf32> to vector<8xf32>
    %15 = vector.shape_cast %14 : vector<8xf32> to vector<8x1xf32>
    %16 = arith.addf %12, %15 : vector<8x1xf32>
    %c0_14 = arith.constant 0 : index
    %c0_15 = arith.constant 0 : index
    %17 = vector.load %arg5[%c0_14, %c0_15] : memref<8x1xf32, #tpu.memory_space<vmem>>, vector<8x1xf32>
    tpu.vector_store %arg5[%c0_14, %c0_15], %16 {strides = array<i32>} : memref<8x1xf32, #tpu.memory_space<vmem>>, vector<8x1xf32>,
    return
  }
  func.func @transform_0(%arg0: i32) -> (i32, i32) {
    %c0_i32 = arith.constant 0 : i32
    %c0_i32_0 = arith.constant 0 : i32
    %c0_i32_1 = arith.constant 0 : i32
    return %c0_i32, %c0_i32_0 : i32, i32
  }
  func.func @transform_1(%arg0: i32) -> (i32, i32) {
    %c0_i32 = arith.constant 0 : i32
    %c0_i32_0 = arith.constant 0 : i32
    return %c0_i32, %arg0 : i32, i32
  }
  func.func @transform_2(%arg0: i32) -> (i32, i32) {
    %c0_i32 = arith.constant 0 : i32
    %c0_i32_0 = arith.constant 0 : i32
    return %c0_i32, %arg0 : i32, i32
  }
  func.func @transform_3(%arg0: i32) -> (i32, i32) {
    %c0_i32 = arith.constant 0 : i32
    %c0_i32_0 = arith.constant 0 : i32
    %c0_i32_1 = arith.constant 0 : i32
    return %c0_i32, %c0_i32_0 : i32, i32
  }
  func.func @transform_4(%arg0: i32) -> (i32, i32) {
    %c0_i32 = arith.constant 0 : i32
    %c0_i32_0 = arith.constant 0 : i32
    %c0_i32_1 = arith.constant 0 : i32
    return %c0_i32, %c0_i32_0 : i32, i32
  }
}

module attributes {stable_mosaic.version = 11 : i64} {
  func.func @_conv_stats_kernel(%arg0: i32, %arg1: memref<8x8xbf16, #tpu.memory_space<vmem>>, %arg2: memref<8x896xbf16, #tpu.memory_space<vmem>>, %arg3: memref<8x896xf32, #tpu.memory_space<vmem>>, %arg4: memref<8x1xf32, #tpu.memory_space<vmem>>, %arg5: memref<8x1xf32, #tpu.memory_space<vmem>>) attributes {dimension_semantics = [#tpu.dimension_semantics<arbitrary>], iteration_bounds = array<i64: 1>, scalar_prefetch = 0 : i64, scratch_operands = 0 : i64, tpu.core_type = #tpu.core_type<tc>, window_params = [{pipeline_mode = #tpu.pipeline_mode<synchronous>, transform_indices = @transform_0, window_bounds = array<i64: 8, 8>}, {transform_indices = @transform_1, window_bounds = array<i64: 8, 896>}, {transform_indices = @transform_2, window_bounds = array<i64: 8, 896>}, {pipeline_mode = #tpu.pipeline_mode<synchronous>, transform_indices = @transform_3, window_bounds = array<i64: 8, 1>}, {pipeline_mode = #tpu.pipeline_mode<synchronous>, transform_indices = @transform_4, window_bounds = array<i64: 8, 1>}]} {
    %c0_i32 = arith.constant 0 : i32
    %0 = arith.cmpi eq, %arg0, %c0_i32 : i32
    %1 = arith.extui %0 : i1 to i32
    %c0_i32_0 = arith.constant 0 : i32
    %2 = arith.cmpi ne, %1, %c0_i32_0 : i32
    scf.if %2 {
      %cst_16 = arith.constant 0.000000e+00 : f32
      %18 = vector.broadcast %cst_16 : f32 to vector<8x1xf32>
      %c0_17 = arith.constant 0 : index
      %c0_18 = arith.constant 0 : index
      %19 = vector.load %arg4[%c0_17, %c0_18] : memref<8x1xf32, #tpu.memory_space<vmem>>, vector<8x1xf32>
      tpu.vector_store %arg4[%c0_17, %c0_18], %18 {strides = array<i32>} : memref<8x1xf32, #tpu.memory_space<vmem>>, vector<8x1xf32>,
      %cst_19 = arith.constant 0.000000e+00 : f32
      %20 = vector.broadcast %cst_19 : f32 to vector<8x1xf32>
      %c0_20 = arith.constant 0 : index
      %c0_21 = arith.constant 0 : index
      %21 = vector.load %arg5[%c0_20, %c0_21] : memref<8x1xf32, #tpu.memory_space<vmem>>, vector<8x1xf32>
      tpu.vector_store %arg5[%c0_20, %c0_21], %20 {strides = array<i32>} : memref<8x1xf32, #tpu.memory_space<vmem>>, vector<8x1xf32>,
    } else {
    }
    %c0 = arith.constant 0 : index
    %c0_1 = arith.constant 0 : index
    %3 = vector.load %arg1[%c0, %c0_1] : memref<8x8xbf16, #tpu.memory_space<vmem>>, vector<8x8xbf16>
    %c0_2 = arith.constant 0 : index
    %c0_3 = arith.constant 0 : index
    %4 = vector.load %arg2[%c0_2, %c0_3] : memref<8x896xbf16, #tpu.memory_space<vmem>>, vector<8x896xbf16>
    %cst = arith.constant dense<0.000000e+00> : vector<8x896xf32>
    %5 = tpu.matmul %3, %4, %cst {dimension_numbers = #tpu.dot_dimension_numbers<[1], [0], [0], [1], [0, 0, 1, 1], [], []>} : vector<8x8xbf16>, vector<8x896xbf16>, vector<8x896xf32> -> vector<8x896xf32>
    %c0_4 = arith.constant 0 : index
    %c0_5 = arith.constant 0 : index
    %6 = vector.load %arg3[%c0_4, %c0_5] : memref<8x896xf32, #tpu.memory_space<vmem>>, vector<8x896xf32>
    tpu.vector_store %arg3[%c0_4, %c0_5], %5 {strides = array<i32>} : memref<8x896xf32, #tpu.memory_space<vmem>>, vector<8x896xf32>,
    %c0_6 = arith.constant 0 : index
    %c0_7 = arith.constant 0 : index
    %7 = vector.load %arg4[%c0_6, %c0_7] : memref<8x1xf32, #tpu.memory_space<vmem>>, vector<8x1xf32>
    %cst_8 = arith.constant dense<0.000000e+00> : vector<8xf32>
    %8 = vector.multi_reduction <add>, %5, %cst_8 [1] : vector<8x896xf32> to vector<8xf32>
    %9 = vector.shape_cast %8 : vector<8xf32> to vector<8x1xf32>
    %10 = arith.addf %7, %9 : vector<8x1xf32>
    %c0_9 = arith.constant 0 : index
    %c0_10 = arith.constant 0 : index
    %11 = vector.load %arg4[%c0_9, %c0_10] : memref<8x1xf32, #tpu.memory_space<vmem>>, vector<8x1xf32>
    tpu.vector_store %arg4[%c0_9, %c0_10], %10 {strides = array<i32>} : memref<8x1xf32, #tpu.memory_space<vmem>>, vector<8x1xf32>,
    %c0_11 = arith.constant 0 : index
    %c0_12 = arith.constant 0 : index
    %12 = vector.load %arg5[%c0_11, %c0_12] : memref<8x1xf32, #tpu.memory_space<vmem>>, vector<8x1xf32>
    %13 = arith.mulf %5, %5 : vector<8x896xf32>
    %cst_13 = arith.constant dense<0.000000e+00> : vector<8xf32>
    %14 = vector.multi_reduction <add>, %13, %cst_13 [1] : vector<8x896xf32> to vector<8xf32>
    %15 = vector.shape_cast %14 : vector<8xf32> to vector<8x1xf32>
    %16 = arith.addf %12, %15 : vector<8x1xf32>
    %c0_14 = arith.constant 0 : index
    %c0_15 = arith.constant 0 : index
    %17 = vector.load %arg5[%c0_14, %c0_15] : memref<8x1xf32, #tpu.memory_space<vmem>>, vector<8x1xf32>
    tpu.vector_store %arg5[%c0_14, %c0_15], %16 {strides = array<i32>} : memref<8x1xf32, #tpu.memory_space<vmem>>, vector<8x1xf32>,
    return
  }
  func.func @transform_0(%arg0: i32) -> (i32, i32) {
    %c0_i32 = arith.constant 0 : i32
    %c0_i32_0 = arith.constant 0 : i32
    %c0_i32_1 = arith.constant 0 : i32
    return %c0_i32, %c0_i32_0 : i32, i32
  }
  func.func @transform_1(%arg0: i32) -> (i32, i32) {
    %c0_i32 = arith.constant 0 : i32
    %c0_i32_0 = arith.constant 0 : i32
    return %c0_i32, %arg0 : i32, i32
  }
  func.func @transform_2(%arg0: i32) -> (i32, i32) {
    %c0_i32 = arith.constant 0 : i32
    %c0_i32_0 = arith.constant 0 : i32
    return %c0_i32, %arg0 : i32, i32
  }
  func.func @transform_3(%arg0: i32) -> (i32, i32) {
    %c0_i32 = arith.constant 0 : i32
    %c0_i32_0 = arith.constant 0 : i32
    %c0_i32_1 = arith.constant 0 : i32
    return %c0_i32, %c0_i32_0 : i32, i32
  }
  func.func @transform_4(%arg0: i32) -> (i32, i32) {
    %c0_i32 = arith.constant 0 : i32
    %c0_i32_0 = arith.constant 0 : i32
    %c0_i32_1 = arith.constant 0 : i32
    return %c0_i32, %c0_i32_0 : i32, i32
  }
}

module attributes {stable_mosaic.version = 11 : i64} {
  func.func @_bn_lrelu_kernel(%arg0: i32, %arg1: memref<8x1024xf32, #tpu.memory_space<vmem>>, %arg2: memref<8x1xf32, #tpu.memory_space<vmem>>, %arg3: memref<8x1xf32, #tpu.memory_space<vmem>>, %arg4: memref<8x1024xf32, #tpu.memory_space<vmem>>) attributes {dimension_semantics = [#tpu.dimension_semantics<parallel>], iteration_bounds = array<i64: 1>, scalar_prefetch = 0 : i64, scratch_operands = 0 : i64, tpu.core_type = #tpu.core_type<tc>, window_params = [{transform_indices = @transform_0, window_bounds = array<i64: 8, 1024>}, {pipeline_mode = #tpu.pipeline_mode<synchronous>, transform_indices = @transform_1, window_bounds = array<i64: 8, 1>}, {pipeline_mode = #tpu.pipeline_mode<synchronous>, transform_indices = @transform_2, window_bounds = array<i64: 8, 1>}, {transform_indices = @transform_3, window_bounds = array<i64: 8, 1024>}]} {
    %c0 = arith.constant 0 : index
    %c0_0 = arith.constant 0 : index
    %0 = vector.load %arg1[%c0, %c0_0] : memref<8x1024xf32, #tpu.memory_space<vmem>>, vector<8x1024xf32>
    %c0_1 = arith.constant 0 : index
    %c0_2 = arith.constant 0 : index
    %1 = vector.load %arg2[%c0_1, %c0_2] : memref<8x1xf32, #tpu.memory_space<vmem>>, vector<8x1xf32>
    %2 = vector.broadcast %1 : vector<8x1xf32> to vector<8x1024xf32>
    %3 = arith.mulf %0, %2 : vector<8x1024xf32>
    %c0_3 = arith.constant 0 : index
    %c0_4 = arith.constant 0 : index
    %4 = vector.load %arg3[%c0_3, %c0_4] : memref<8x1xf32, #tpu.memory_space<vmem>>, vector<8x1xf32>
    %5 = vector.broadcast %4 : vector<8x1xf32> to vector<8x1024xf32>
    %6 = arith.addf %3, %5 : vector<8x1024xf32>
    %cst = arith.constant 0.000000e+00 : f32
    %7 = vector.broadcast %cst : f32 to vector<8x1024xf32>
    %8 = arith.cmpf oge, %6, %7 : vector<8x1024xf32>
    %cst_5 = arith.constant 1.000000e-01 : f32
    %9 = vector.broadcast %cst_5 : f32 to vector<8x1024xf32>
    %10 = arith.mulf %9, %6 : vector<8x1024xf32>
    %11 = arith.select %8, %6, %10 : vector<8x1024xi1>, vector<8x1024xf32>
    %c0_6 = arith.constant 0 : index
    %c0_7 = arith.constant 0 : index
    %12 = vector.load %arg4[%c0_6, %c0_7] : memref<8x1024xf32, #tpu.memory_space<vmem>>, vector<8x1024xf32>
    tpu.vector_store %arg4[%c0_6, %c0_7], %11 {strides = array<i32>} : memref<8x1024xf32, #tpu.memory_space<vmem>>, vector<8x1024xf32>,
    return
  }
  func.func @transform_0(%arg0: i32) -> (i32, i32) {
    %c0_i32 = arith.constant 0 : i32
    %c0_i32_0 = arith.constant 0 : i32
    return %c0_i32, %arg0 : i32, i32
  }
  func.func @transform_1(%arg0: i32) -> (i32, i32) {
    %c0_i32 = arith.constant 0 : i32
    %c0_i32_0 = arith.constant 0 : i32
    %c0_i32_1 = arith.constant 0 : i32
    return %c0_i32, %c0_i32_0 : i32, i32
  }
  func.func @transform_2(%arg0: i32) -> (i32, i32) {
    %c0_i32 = arith.constant 0 : i32
    %c0_i32_0 = arith.constant 0 : i32
    %c0_i32_1 = arith.constant 0 : i32
    return %c0_i32, %c0_i32_0 : i32, i32
  }
  func.func @transform_3(%arg0: i32) -> (i32, i32) {
    %c0_i32 = arith.constant 0 : i32
    %c0_i32_0 = arith.constant 0 : i32
    return %c0_i32, %arg0 : i32, i32
  }
}

module attributes {stable_mosaic.version = 11 : i64} {
  func.func @_bn_lrelu_kernel(%arg0: i32, %arg1: memref<8x896xf32, #tpu.memory_space<vmem>>, %arg2: memref<8x1xf32, #tpu.memory_space<vmem>>, %arg3: memref<8x1xf32, #tpu.memory_space<vmem>>, %arg4: memref<8x896xf32, #tpu.memory_space<vmem>>) attributes {dimension_semantics = [#tpu.dimension_semantics<parallel>], iteration_bounds = array<i64: 1>, scalar_prefetch = 0 : i64, scratch_operands = 0 : i64, tpu.core_type = #tpu.core_type<tc>, window_params = [{transform_indices = @transform_0, window_bounds = array<i64: 8, 896>}, {pipeline_mode = #tpu.pipeline_mode<synchronous>, transform_indices = @transform_1, window_bounds = array<i64: 8, 1>}, {pipeline_mode = #tpu.pipeline_mode<synchronous>, transform_indices = @transform_2, window_bounds = array<i64: 8, 1>}, {transform_indices = @transform_3, window_bounds = array<i64: 8, 896>}]} {
    %c0 = arith.constant 0 : index
    %c0_0 = arith.constant 0 : index
    %0 = vector.load %arg1[%c0, %c0_0] : memref<8x896xf32, #tpu.memory_space<vmem>>, vector<8x896xf32>
    %c0_1 = arith.constant 0 : index
    %c0_2 = arith.constant 0 : index
    %1 = vector.load %arg2[%c0_1, %c0_2] : memref<8x1xf32, #tpu.memory_space<vmem>>, vector<8x1xf32>
    %2 = vector.broadcast %1 : vector<8x1xf32> to vector<8x896xf32>
    %3 = arith.mulf %0, %2 : vector<8x896xf32>
    %c0_3 = arith.constant 0 : index
    %c0_4 = arith.constant 0 : index
    %4 = vector.load %arg3[%c0_3, %c0_4] : memref<8x1xf32, #tpu.memory_space<vmem>>, vector<8x1xf32>
    %5 = vector.broadcast %4 : vector<8x1xf32> to vector<8x896xf32>
    %6 = arith.addf %3, %5 : vector<8x896xf32>
    %cst = arith.constant 0.000000e+00 : f32
    %7 = vector.broadcast %cst : f32 to vector<8x896xf32>
    %8 = arith.cmpf oge, %6, %7 : vector<8x896xf32>
    %cst_5 = arith.constant 1.000000e-01 : f32
    %9 = vector.broadcast %cst_5 : f32 to vector<8x896xf32>
    %10 = arith.mulf %9, %6 : vector<8x896xf32>
    %11 = arith.select %8, %6, %10 : vector<8x896xi1>, vector<8x896xf32>
    %c0_6 = arith.constant 0 : index
    %c0_7 = arith.constant 0 : index
    %12 = vector.load %arg4[%c0_6, %c0_7] : memref<8x896xf32, #tpu.memory_space<vmem>>, vector<8x896xf32>
    tpu.vector_store %arg4[%c0_6, %c0_7], %11 {strides = array<i32>} : memref<8x896xf32, #tpu.memory_space<vmem>>, vector<8x896xf32>,
    return
  }
  func.func @transform_0(%arg0: i32) -> (i32, i32) {
    %c0_i32 = arith.constant 0 : i32
    %c0_i32_0 = arith.constant 0 : i32
    return %c0_i32, %arg0 : i32, i32
  }
  func.func @transform_1(%arg0: i32) -> (i32, i32) {
    %c0_i32 = arith.constant 0 : i32
    %c0_i32_0 = arith.constant 0 : i32
    %c0_i32_1 = arith.constant 0 : i32
    return %c0_i32, %c0_i32_0 : i32, i32
  }
  func.func @transform_2(%arg0: i32) -> (i32, i32) {
    %c0_i32 = arith.constant 0 : i32
    %c0_i32_0 = arith.constant 0 : i32
    %c0_i32_1 = arith.constant 0 : i32
    return %c0_i32, %c0_i32_0 : i32, i32
  }
  func.func @transform_3(%arg0: i32) -> (i32, i32) {
    %c0_i32 = arith.constant 0 : i32
    %c0_i32_0 = arith.constant 0 : i32
    return %c0_i32, %arg0 : i32, i32
  }
}

module attributes {stable_mosaic.version = 11 : i64} {
  func.func @_bn_lrelu_kernel(%arg0: i32, %arg1: memref<8x768xf32, #tpu.memory_space<vmem>>, %arg2: memref<8x1xf32, #tpu.memory_space<vmem>>, %arg3: memref<8x1xf32, #tpu.memory_space<vmem>>, %arg4: memref<8x768xf32, #tpu.memory_space<vmem>>) attributes {dimension_semantics = [#tpu.dimension_semantics<parallel>], iteration_bounds = array<i64: 1>, scalar_prefetch = 0 : i64, scratch_operands = 0 : i64, tpu.core_type = #tpu.core_type<tc>, window_params = [{transform_indices = @transform_0, window_bounds = array<i64: 8, 768>}, {pipeline_mode = #tpu.pipeline_mode<synchronous>, transform_indices = @transform_1, window_bounds = array<i64: 8, 1>}, {pipeline_mode = #tpu.pipeline_mode<synchronous>, transform_indices = @transform_2, window_bounds = array<i64: 8, 1>}, {transform_indices = @transform_3, window_bounds = array<i64: 8, 768>}]} {
    %c0 = arith.constant 0 : index
    %c0_0 = arith.constant 0 : index
    %0 = vector.load %arg1[%c0, %c0_0] : memref<8x768xf32, #tpu.memory_space<vmem>>, vector<8x768xf32>
    %c0_1 = arith.constant 0 : index
    %c0_2 = arith.constant 0 : index
    %1 = vector.load %arg2[%c0_1, %c0_2] : memref<8x1xf32, #tpu.memory_space<vmem>>, vector<8x1xf32>
    %2 = vector.broadcast %1 : vector<8x1xf32> to vector<8x768xf32>
    %3 = arith.mulf %0, %2 : vector<8x768xf32>
    %c0_3 = arith.constant 0 : index
    %c0_4 = arith.constant 0 : index
    %4 = vector.load %arg3[%c0_3, %c0_4] : memref<8x1xf32, #tpu.memory_space<vmem>>, vector<8x1xf32>
    %5 = vector.broadcast %4 : vector<8x1xf32> to vector<8x768xf32>
    %6 = arith.addf %3, %5 : vector<8x768xf32>
    %cst = arith.constant 0.000000e+00 : f32
    %7 = vector.broadcast %cst : f32 to vector<8x768xf32>
    %8 = arith.cmpf oge, %6, %7 : vector<8x768xf32>
    %cst_5 = arith.constant 1.000000e-01 : f32
    %9 = vector.broadcast %cst_5 : f32 to vector<8x768xf32>
    %10 = arith.mulf %9, %6 : vector<8x768xf32>
    %11 = arith.select %8, %6, %10 : vector<8x768xi1>, vector<8x768xf32>
    %c0_6 = arith.constant 0 : index
    %c0_7 = arith.constant 0 : index
    %12 = vector.load %arg4[%c0_6, %c0_7] : memref<8x768xf32, #tpu.memory_space<vmem>>, vector<8x768xf32>
    tpu.vector_store %arg4[%c0_6, %c0_7], %11 {strides = array<i32>} : memref<8x768xf32, #tpu.memory_space<vmem>>, vector<8x768xf32>,
    return
  }
  func.func @transform_0(%arg0: i32) -> (i32, i32) {
    %c0_i32 = arith.constant 0 : i32
    %c0_i32_0 = arith.constant 0 : i32
    return %c0_i32, %arg0 : i32, i32
  }
  func.func @transform_1(%arg0: i32) -> (i32, i32) {
    %c0_i32 = arith.constant 0 : i32
    %c0_i32_0 = arith.constant 0 : i32
    %c0_i32_1 = arith.constant 0 : i32
    return %c0_i32, %c0_i32_0 : i32, i32
  }
  func.func @transform_2(%arg0: i32) -> (i32, i32) {
    %c0_i32 = arith.constant 0 : i32
    %c0_i32_0 = arith.constant 0 : i32
    %c0_i32_1 = arith.constant 0 : i32
    return %c0_i32, %c0_i32_0 : i32, i32
  }
  func.func @transform_3(%arg0: i32) -> (i32, i32) {
    %c0_i32 = arith.constant 0 : i32
    %c0_i32_0 = arith.constant 0 : i32
    return %c0_i32, %arg0 : i32, i32
  }
}

</mosaic_0001>

<llo_original>
// kernel: conv_transpose_net.16
$region0: #{conv_transpose_net.16}
  #allocation0 [shape = 'u32[]', space=smem, size = 0x4, offset = 0x4, fixed_abs, tag = 'smem constant byte address 0x4 - core index']
  #allocation1 [shape = 'u32[144,128]{1,0:T(1,128)}', space=vmem, size = 0x12000, scoped, tag = 'internal scratch']
  %s0 = inlined_call_operand.vmem [shape: bf16[8,4], index: 0, kind: input, shape index: {}]
  %s1 = inlined_call_operand.vmem [shape: bf16[4,1024], index: 1, kind: input, shape index: {}]
  %s2 = inlined_call_operand.vmem [shape: f32[8,1024], index: 2, kind: output, shape index: {0}]
  %s3 = inlined_call_operand.vmem [shape: f32[8,1], index: 3, kind: output, shape index: {1}]
  %s4 = inlined_call_operand.vmem [shape: f32[8,1], index: 4, kind: output, shape index: {2}]
  %5 = xla_tuple %s2, %s3, %s4
  %s6 = sld [smem:[#allocation0]]
  $region38: #{conv_transpose_net.16} parent=0
    _
  %s8 = ssub.s32 1, %s6
  %s9 = scalar_select 0, %s8, %s6
  // Predicated region
  $region2: #{conv_transpose_net.16} parent=0 // pred_check
    _
  $region3: #{conv_transpose_net.16} parent=0 // pred_check_branch
    %11 = sbr.rel (0) target = $region5
  $region4: #{conv_transpose_net.16} parent=0 // pred_region
    _
  $region5: #{conv_transpose_net.16} parent=0 // pred_fallthru
    _
  // Predicated region
  $region6: #{conv_transpose_net.16} parent=0 // pred_check
    _
  $region7: #{conv_transpose_net.16} parent=0 // pred_check_branch
    %13 = sbr.rel (0) target = $region9
  $region8: #{conv_transpose_net.16} parent=0 // pred_region
    _
  $region9: #{conv_transpose_net.16} parent=0 // pred_fallthru
    _
  %p15 = scmp.eq.s32.totalorder 0, 0
  // Predicated region
  $region10: #{conv_transpose_net.16} parent=0 // pred_check
    %p16 = pneg %p15
  $region11: #{conv_transpose_net.16} parent=0 // pred_check_branch
    %18 = sbr.rel (%p16) target = $region13
  $region12: #{conv_transpose_net.16} parent=0 // pred_region
    %vm19 = vcmask 7168
    %20 = vst.msk [vmem:[%s3] sm:$0xff] %vm19, 0.0
    %21 = vst.msk [vmem:[%s4] sm:$0xff] %vm19, 0.0
  $region13: #{conv_transpose_net.16} parent=0 // pred_fallthru
    _
  %v22 = vld [vmem:[%s0] sm:$0xf]
  %v23 = vld [vmem:[%s1] sm:$0xff]
  %v24 = vld [vmem:[%s1 + $0x8] sm:$0xff]
  %v27 = vcombine.high %v23, %v23
  %v29 = vunpack.c.l.s4 1983009808
  %v30 = vunpack.c.0.s8 %v29
  %v31 = vlaneseq
  %v32 = vshrl.u32 %v31, 7
  %v33 = vsub.s32 %v30, %v32
  %v34 = vrot.slane %v23, %v33
  %v36 = vunpack.c.l.s4 1983009808
  %v37 = vunpack.c.0.s8 %v36
  %v38 = vlaneseq
  %v39 = vshrl.u32 %v38, 7
  %v40 = vsub.s32 %v37, %v39
  %v41 = vrot.slane %v27, %v40
  %v42 = vcombine.high %v34, %v34
  %v43 = vcombine.high %v41, %v41
  %v44 = vcombine.high %v24, %v24
  %v46 = vunpack.c.l.s4 1983009808
  %v47 = vunpack.c.0.s8 %v46
  %v48 = vlaneseq
  %v49 = vshrl.u32 %v48, 7
  %v50 = vsub.s32 %v47, %v49
  %v51 = vrot.slane %v24, %v50
  %v53 = vunpack.c.l.s4 1983009808
  %v54 = vunpack.c.0.s8 %v53
  %v55 = vlaneseq
  %v56 = vshrl.u32 %v55, 7
  %v57 = vsub.s32 %v54, %v56
  %v58 = vrot.slane %v44, %v57
  %v59 = vcombine.high %v51, %v51
  %v60 = vcombine.high %v58, %v58
  %vm61 = vcmask 31744
  %v63 = vsel %vm61, %v22, 0
  %vm65 = vcmask 1041408
  %v67 = vsel %vm65, %v34, 0
  %v70 = vsel %vm65, %v42, 0
  %v73 = vsel %vm65, %v41, 0
  %v76 = vsel %vm65, %v43, 0
  %v79 = vsel %vm65, %v51, 0
  %v82 = vsel %vm65, %v59, 0
  %v85 = vsel %vm65, %v58, 0
  %v88 = vsel %vm65, %v60, 0
  %90 = vmatprep.subr.bf16.mxu0 0
  %91 = vmatpush1.bf16.msra.mxu0 0
  %92 = vmatprep.subr.bf16.mxu0 0
  %93 = vmatpush1.bf16.msra.mxu0 0
  %94 = vmatprep.subr.bf16.mxu0 0
  %95 = vmatpush1.bf16.msra.mxu0 0
  %96 = vmatprep.subr.bf16.mxu0 0
  %97 = vmatpush1.bf16.msra.mxu0 0
  %98 = vmatprep.subr.bf16.mxu0 0
  %99 = vmatpush1.bf16.msra.mxu0 0
  %100 = vmatprep.subr.bf16.mxu0 0
  %101 = vmatpush1.bf16.msra.mxu0 0
  %102 = vmatprep.subr.bf16.mxu0 0
  %103 = vmatpush1.bf16.msra.mxu0 0
  %104 = vmatprep.subr.bf16.mxu0 %v70
  %105 = vmatpush1.bf16.msra.mxu0 %v67
  %106 = vmatprep.subr.bf16.mxu0 0
  %107 = vmatpush2.bf16.msra.mxu0 0
  %108 = vmatprep.subr.bf16.mxu0 0
  %109 = vmatpush2.bf16.msra.mxu0 0
  %110 = vmatprep.subr.bf16.mxu0 0
  %111 = vmatpush2.bf16.msra.mxu0 0
  %112 = vmatprep.subr.bf16.mxu0 0
  %113 = vmatpush2.bf16.msra.mxu0 0
  %114 = vmatprep.subr.bf16.mxu0 0
  %115 = vmatpush2.bf16.msra.mxu0 0
  %116 = vmatprep.subr.bf16.mxu0 0
  %117 = vmatpush2.bf16.msra.mxu0 0
  %118 = vmatprep.subr.bf16.mxu0 0
  %119 = vmatpush2.bf16.msra.mxu0 0
  %120 = vmatprep.subr.bf16.mxu0 0
  %121 = vmatpush2.bf16.msra.mxu0 0
  %122 = vmatprep.mubr.bf16.mxu0 0
  %123 = vmatmul.mubr.bf16.gmra.mxu0 %v63
  %v124 = vpop.f32.mrf.mxu0
  %v125 = vadd.f32 0.0, %v124
  %v126 = vpop.f32.mrf.mxu0
  %v127 = vadd.f32 0.0, %v126
  %v128 = vpop.f32.mrf.mxu0
  %v129 = vpop.f32.mrf.mxu0
  %130 = vdwg.mxu0
  %131 = vmatprep.subr.bf16.mxu0 0
  %132 = vmatpush1.bf16.msra.mxu0 0
  %133 = vmatprep.subr.bf16.mxu0 0
  %134 = vmatpush1.bf16.msra.mxu0 0
  %135 = vmatprep.subr.bf16.mxu0 0
  %136 = vmatpush1.bf16.msra.mxu0 0
  %137 = vmatprep.subr.bf16.mxu0 0
  %138 = vmatpush1.bf16.msra.mxu0 0
  %139 = vmatprep.subr.bf16.mxu0 0
  %140 = vmatpush1.bf16.msra.mxu0 0
  %141 = vmatprep.subr.bf16.mxu0 0
  %142 = vmatpush1.bf16.msra.mxu0 0
  %143 = vmatprep.subr.bf16.mxu0 0
  %144 = vmatpush1.bf16.msra.mxu0 0
  %145 = vmatprep.subr.bf16.mxu0 %v76
  %146 = vmatpush1.bf16.msra.mxu0 %v73
  %147 = vmatprep.subr.bf16.mxu0 0
  %148 = vmatpush2.bf16.msra.mxu0 0
  %149 = vmatprep.subr.bf16.mxu0 0
  %150 = vmatpush2.bf16.msra.mxu0 0
  %151 = vmatprep.subr.bf16.mxu0 0
  %152 = vmatpush2.bf16.msra.mxu0 0
  %153 = vmatprep.subr.bf16.mxu0 0
  %154 = vmatpush2.bf16.msra.mxu0 0
  %155 = vmatprep.subr.bf16.mxu0 0
  %156 = vmatpush2.bf16.msra.mxu0 0
  %157 = vmatprep.subr.bf16.mxu0 0
  %158 = vmatpush2.bf16.msra.mxu0 0
  %159 = vmatprep.subr.bf16.mxu0 0
  %160 = vmatpush2.bf16.msra.mxu0 0
  %161 = vmatprep.subr.bf16.mxu0 0
  %162 = vmatpush2.bf16.msra.mxu0 0
  %163 = vmatprep.mubr.bf16.mxu0 0
  %164 = vmatmul.mubr.bf16.gmra.mxu0 %v63
  %v165 = vpop.f32.mrf.mxu0
  %v166 = vadd.f32 0.0, %v165
  %v167 = vpop.f32.mrf.mxu0
  %v168 = vadd.f32 0.0, %v167
  %v169 = vpop.f32.mrf.mxu0
  %v170 = vpop.f32.mrf.mxu0
  %171 = vdwg.mxu0
  %172 = vmatprep.subr.bf16.mxu0 0
  %173 = vmatpush1.bf16.msra.mxu0 0
  %174 = vmatprep.subr.bf16.mxu0 0
  %175 = vmatpush1.bf16.msra.mxu0 0
  %176 = vmatprep.subr.bf16.mxu0 0
  %177 = vmatpush1.bf16.msra.mxu0 0
  %178 = vmatprep.subr.bf16.mxu0 0
  %179 = vmatpush1.bf16.msra.mxu0 0
  %180 = vmatprep.subr.bf16.mxu0 0
  %181 = vmatpush1.bf16.msra.mxu0 0
  %182 = vmatprep.subr.bf16.mxu0 0
  %183 = vmatpush1.bf16.msra.mxu0 0
  %184 = vmatprep.subr.bf16.mxu0 0
  %185 = vmatpush1.bf16.msra.mxu0 0
  %186 = vmatprep.subr.bf16.mxu0 %v82
  %187 = vmatpush1.bf16.msra.mxu0 %v79
  %188 = vmatprep.subr.bf16.mxu0 0
  %189 = vmatpush2.bf16.msra.mxu0 0
  %190 = vmatprep.subr.bf16.mxu0 0
  %191 = vmatpush2.bf16.msra.mxu0 0
  %192 = vmatprep.subr.bf16.mxu0 0
  %193 = vmatpush2.bf16.msra.mxu0 0
  %194 = vmatprep.subr.bf16.mxu0 0
  %195 = vmatpush2.bf16.msra.mxu0 0
  %196 = vmatprep.subr.bf16.mxu0 0
  %197 = vmatpush2.bf16.msra.mxu0 0
  %198 = vmatprep.subr.bf16.mxu0 0
  %199 = vmatpush2.bf16.msra.mxu0 0
  %200 = vmatprep.subr.bf16.mxu0 0
  %201 = vmatpush2.bf16.msra.mxu0 0
  %202 = vmatprep.subr.bf16.mxu0 0
  %203 = vmatpush2.bf16.msra.mxu0 0
  %204 = vmatprep.mubr.bf16.mxu0 0
  %205 = vmatmul.mubr.bf16.gmra.mxu0 %v63
  %v206 = vpop.f32.mrf.mxu0
  %v207 = vadd.f32 0.0, %v206
  %v208 = vpop.f32.mrf.mxu0
  %v209 = vadd.f32 0.0, %v208
  %v210 = vpop.f32.mrf.mxu0
  %v211 = vpop.f32.mrf.mxu0
  %212 = vdwg.mxu0
  %213 = vmatprep.subr.bf16.mxu0 0
  %214 = vmatpush1.bf16.msra.mxu0 0
  %215 = vmatprep.subr.bf16.mxu0 0
  %216 = vmatpush1.bf16.msra.mxu0 0
  %217 = vmatprep.subr.bf16.mxu0 0
  %218 = vmatpush1.bf16.msra.mxu0 0
  %219 = vmatprep.subr.bf16.mxu0 0
  %220 = vmatpush1.bf16.msra.mxu0 0
  %221 = vmatprep.subr.bf16.mxu0 0
  %222 = vmatpush1.bf16.msra.mxu0 0
  %223 = vmatprep.subr.bf16.mxu0 0
  %224 = vmatpush1.bf16.msra.mxu0 0
  %225 = vmatprep.subr.bf16.mxu0 0
  %226 = vmatpush1.bf16.msra.mxu0 0
  %227 = vmatprep.subr.bf16.mxu0 %v88
  %228 = vmatpush1.bf16.msra.mxu0 %v85
  %229 = vmatprep.subr.bf16.mxu0 0
  %230 = vmatpush2.bf16.msra.mxu0 0
  %231 = vmatprep.subr.bf16.mxu0 0
  %232 = vmatpush2.bf16.msra.mxu0 0
  %233 = vmatprep.subr.bf16.mxu0 0
  %234 = vmatpush2.bf16.msra.mxu0 0
  %235 = vmatprep.subr.bf16.mxu0 0
  %236 = vmatpush2.bf16.msra.mxu0 0
  %237 = vmatprep.subr.bf16.mxu0 0
  %238 = vmatpush2.bf16.msra.mxu0 0
  %239 = vmatprep.subr.bf16.mxu0 0
  %240 = vmatpush2.bf16.msra.mxu0 0
  %241 = vmatprep.subr.bf16.mxu0 0
  %242 = vmatpush2.bf16.msra.mxu0 0
  %243 = vmatprep.subr.bf16.mxu0 0
  %244 = vmatpush2.bf16.msra.mxu0 0
  %245 = vmatprep.mubr.bf16.mxu0 0
  %246 = vmatmul.mubr.bf16.gmra.mxu0 %v63
  %v247 = vpop.f32.mrf.mxu0
  %v248 = vadd.f32 0.0, %v247
  %v249 = vpop.f32.mrf.mxu0
  %v250 = vadd.f32 0.0, %v249
  %v251 = vpop.f32.mrf.mxu0
  %v252 = vpop.f32.mrf.mxu0
  %253 = vdwg.mxu0
  %254 = vst [vmem:[%s2] sm:$0xff] %v125
  %255 = vst [vmem:[%s2 + $0x8] sm:$0xff] %v127
  %256 = vst [vmem:[%s2 + $0x10] sm:$0xff] %v166
  %257 = vst [vmem:[%s2 + $0x18] sm:$0xff] %v168
  %258 = vst [vmem:[%s2 + $0x20] sm:$0xff] %v207
  %259 = vst [vmem:[%s2 + $0x28] sm:$0xff] %v209
  %260 = vst [vmem:[%s2 + $0x30] sm:$0xff] %v248
  %261 = vst [vmem:[%s2 + $0x38] sm:$0xff] %v250
  %v262 = vld [vmem:[%s3] sm:$0xff]
  %v263 = vadd.f32 %v125, %v127
  %v264 = vadd.f32 %v263, %v166
  %v265 = vadd.f32 %v264, %v168
  %v266 = vadd.f32 %v265, %v207
  %v267 = vadd.f32 %v266, %v209
  %v268 = vadd.f32 %v267, %v248
  %v269 = vadd.f32 %v268, %v250
  %270 = vadd.xlane.f32.xlu0 %v269
  %v271 = vpop.xlane.xlu0 %270
  %v272 = vadd.f32 %v262, %v271
  %vm273 = vcmask 7168
  %274 = vst.msk [vmem:[%s3] sm:$0xff] %vm273, %v272
  %v275 = vld [vmem:[%s4] sm:$0xff]
  %v276 = vmul.f32 %v125, %v125
  %v277 = vmul.f32 %v127, %v127
  %v278 = vmul.f32 %v166, %v166
  %v279 = vmul.f32 %v168, %v168
  %v280 = vmul.f32 %v207, %v207
  %v281 = vmul.f32 %v209, %v209
  %v282 = vmul.f32 %v248, %v248
  %v283 = vmul.f32 %v250, %v250
  %v284 = vadd.f32 %v276, %v277
  %v285 = vadd.f32 %v284, %v278
  %v286 = vadd.f32 %v285, %v279
  %v287 = vadd.f32 %v286, %v280
  %v288 = vadd.f32 %v287, %v281
  %v289 = vadd.f32 %v288, %v282
  %v290 = vadd.f32 %v289, %v283
  %291 = vadd.xlane.f32.xlu0 %v290
  %v292 = vpop.xlane.xlu0 %291
  %v293 = vadd.f32 %v275, %v292
  %294 = vst.msk [vmem:[%s4] sm:$0xff] %vm273, %v293
  // Predicated region
  $region14: #{conv_transpose_net.16} parent=0 // pred_check
    _
  $region15: #{conv_transpose_net.16} parent=0 // pred_check_branch
    %296 = sbr.rel (0) target = $region17
  $region16: #{conv_transpose_net.16} parent=0 // pred_region
    _
  $region17: #{conv_transpose_net.16} parent=0 // pred_fallthru
    _
  // Predicated region
  $region18: #{conv_transpose_net.16} parent=0 // pred_check
    _
  $region19: #{conv_transpose_net.16} parent=0 // pred_check_branch
    %298 = sbr.rel (0) target = $region21
  $region20: #{conv_transpose_net.16} parent=0 // pred_region
    _
  $region21: #{conv_transpose_net.16} parent=0 // pred_fallthru
    _
  // Predicated region
  $region22: #{conv_transpose_net.16} parent=0 // pred_check
    _
  $region23: #{conv_transpose_net.16} parent=0 // pred_check_branch
    %300 = sbr.rel (0) target = $region25
  $region24: #{conv_transpose_net.16} parent=0 // pred_region
    _
  $region25: #{conv_transpose_net.16} parent=0 // pred_fallthru
    _
  // Predicated region
  $region26: #{conv_transpose_net.16} parent=0 // pred_check
    _
  $region27: #{conv_transpose_net.16} parent=0 // pred_check_branch
    %302 = sbr.rel (0) target = $region29
  $region28: #{conv_transpose_net.16} parent=0 // pred_region
    _
  $region29: #{conv_transpose_net.16} parent=0 // pred_fallthru
    _
  // Predicated region
  $region30: #{conv_transpose_net.16} parent=0 // pred_check
    _
  $region31: #{conv_transpose_net.16} parent=0 // pred_check_branch
    %304 = sbr.rel (0) target = $region33
  $region32: #{conv_transpose_net.16} parent=0 // pred_region
    _
  $region33: #{conv_transpose_net.16} parent=0 // pred_fallthru
    _
  // Predicated region
  $region34: #{conv_transpose_net.16} parent=0 // pred_check
    _
  $region35: #{conv_transpose_net.16} parent=0 // pred_check_branch
    %306 = sbr.rel (0) target = $region37
  $region36: #{conv_transpose_net.16} parent=0 // pred_region
    _
  $region37: #{conv_transpose_net.16} parent=0 // pred_fallthru
    _

// kernel: conv_transpose_net.23
$region0: #{conv_transpose_net.23}
  #allocation0 [shape = 'u32[]', space=smem, size = 0x4, offset = 0x4, fixed_abs, tag = 'smem constant byte address 0x4 - core index']
  #allocation1 [shape = 'u32[144,128]{1,0:T(1,128)}', space=vmem, size = 0x12000, scoped, tag = 'internal scratch']
  %s0 = inlined_call_operand.vmem [shape: bf16[8,32], index: 0, kind: input, shape index: {}]
  %s1 = inlined_call_operand.vmem [shape: bf16[32,768], index: 1, kind: input, shape index: {}]
  %s2 = inlined_call_operand.vmem [shape: f32[8,768], index: 2, kind: output, shape index: {0}]
  %s3 = inlined_call_operand.vmem [shape: f32[8,1], index: 3, kind: output, shape index: {1}]
  %s4 = inlined_call_operand.vmem [shape: f32[8,1], index: 4, kind: output, shape index: {2}]
  %5 = xla_tuple %s2, %s3, %s4
  %s6 = sld [smem:[#allocation0]]
  $region38: #{conv_transpose_net.23} parent=0
    _
  %s8 = ssub.s32 1, %s6
  %s9 = scalar_select 0, %s8, %s6
  // Predicated region
  $region2: #{conv_transpose_net.23} parent=0 // pred_check
    _
  $region3: #{conv_transpose_net.23} parent=0 // pred_check_branch
    %11 = sbr.rel (0) target = $region5
  $region4: #{conv_transpose_net.23} parent=0 // pred_region
    _
  $region5: #{conv_transpose_net.23} parent=0 // pred_fallthru
    _
  // Predicated region
  $region6: #{conv_transpose_net.23} parent=0 // pred_check
    _
  $region7: #{conv_transpose_net.23} parent=0 // pred_check_branch
    %13 = sbr.rel (0) target = $region9
  $region8: #{conv_transpose_net.23} parent=0 // pred_region
    _
  $region9: #{conv_transpose_net.23} parent=0 // pred_fallthru
    _
  %p15 = scmp.eq.s32.totalorder 0, 0
  // Predicated region
  $region10: #{conv_transpose_net.23} parent=0 // pred_check
    %p16 = pneg %p15
  $region11: #{conv_transpose_net.23} parent=0 // pred_check_branch
    %18 = sbr.rel (%p16) target = $region13
  $region12: #{conv_transpose_net.23} parent=0 // pred_region
    %vm19 = vcmask 7168
    %20 = vst.msk [vmem:[%s3] sm:$0xff] %vm19, 0.0
    %21 = vst.msk [vmem:[%s4] sm:$0xff] %vm19, 0.0
  $region13: #{conv_transpose_net.23} parent=0 // pred_fallthru
    _
  %v22 = vld [vmem:[%s0] sm:$0xf]
  %v23 = vld [vmem:[%s1] sm:$0xff]
  %v24 = vld [vmem:[%s1 + $0x8] sm:$0xff]
  %v25 = vld [vmem:[%s1 + $0x10] sm:$0xff]
  %v26 = vld [vmem:[%s1 + $0x18] sm:$0xff]
  %v27 = vld [vmem:[%s1 + $0x20] sm:$0xff]
  %v28 = vld [vmem:[%s1 + $0x28] sm:$0xff]
  %v29 = vld [vmem:[%s1 + $0x30] sm:$0xff]
  %v30 = vld [vmem:[%s1 + $0x38] sm:$0xff]
  %v31 = vld [vmem:[%s1 + $0x40] sm:$0xff]
  %v32 = vld [vmem:[%s1 + $0x48] sm:$0xff]
  %v33 = vld [vmem:[%s1 + $0x50] sm:$0xff]
  %v34 = vld [vmem:[%s1 + $0x58] sm:$0xff]
  %v47 = vunpack.c.l.b16 %v23
  %v48 = vunpack.c.h.b16 %v23
  %v49 = vunpack.c.l.b16 %v24
  %v50 = vunpack.c.h.b16 %v24
  %v51 = vunpack.c.l.b16 %v25
  %v52 = vunpack.c.h.b16 %v25
  %v53 = vunpack.c.l.b16 %v26
  %v54 = vunpack.c.h.b16 %v26
  %v55 = vunpack.c.l.b16 %v27
  %v56 = vunpack.c.h.b16 %v27
  %v57 = vunpack.c.l.b16 %v28
  %v58 = vunpack.c.h.b16 %v28
  %v59 = vunpack.c.l.b16 %v29
  %v60 = vunpack.c.h.b16 %v29
  %v61 = vunpack.c.l.b16 %v30
  %v62 = vunpack.c.h.b16 %v30
  %v63 = vunpack.c.l.b16 %v31
  %v64 = vunpack.c.h.b16 %v31
  %v65 = vunpack.c.l.b16 %v32
  %v66 = vunpack.c.h.b16 %v32
  %v67 = vunpack.c.l.b16 %v33
  %v68 = vunpack.c.h.b16 %v33
  %v69 = vunpack.c.l.b16 %v34
  %v70 = vunpack.c.h.b16 %v34
  %v71 = vpack.c.b16 %v53, %v47
  %v72 = vpack.c.b16 %v54, %v48
  %v73 = vpack.c.b16 %v55, %v49
  %v74 = vpack.c.b16 %v56, %v50
  %v75 = vpack.c.b16 %v57, %v51
  %v76 = vpack.c.b16 %v58, %v52
  %v77 = vpack.c.b16 %v65, %v59
  %v78 = vpack.c.b16 %v66, %v60
  %v79 = vpack.c.b16 %v67, %v61
  %v80 = vpack.c.b16 %v68, %v62
  %v81 = vpack.c.b16 %v69, %v63
  %v82 = vpack.c.b16 %v70, %v64
  %vm95 = vcmask 261120
  %v97 = vsel %vm95, %v22, 0
  %99 = vmatprep.subr.bf16.mxu0 0
  %100 = vmatpush1.bf16.msra.mxu0 0
  %101 = vmatprep.subr.bf16.mxu0 0
  %102 = vmatpush1.bf16.msra.mxu0 0
  %103 = vmatprep.subr.bf16.mxu0 0
  %104 = vmatpush1.bf16.msra.mxu0 0
  %105 = vmatprep.subr.bf16.mxu0 0
  %106 = vmatpush1.bf16.msra.mxu0 0
  %107 = vmatprep.subr.bf16.mxu0 0
  %108 = vmatpush1.bf16.msra.mxu0 0
  %109 = vmatprep.subr.bf16.mxu0 0
  %110 = vmatpush1.bf16.msra.mxu0 0
  %111 = vmatprep.subr.bf16.mxu0 %v78
  %112 = vmatpush1.bf16.msra.mxu0 %v77
  %113 = vmatprep.subr.bf16.mxu0 %v72
  %114 = vmatpush1.bf16.msra.mxu0 %v71
  %115 = vmatprep.subr.bf16.mxu0 0
  %116 = vmatpush2.bf16.msra.mxu0 0
  %117 = vmatprep.subr.bf16.mxu0 0
  %118 = vmatpush2.bf16.msra.mxu0 0
  %119 = vmatprep.subr.bf16.mxu0 0
  %120 = vmatpush2.bf16.msra.mxu0 0
  %121 = vmatprep.subr.bf16.mxu0 0
  %122 = vmatpush2.bf16.msra.mxu0 0
  %123 = vmatprep.subr.bf16.mxu0 0
  %124 = vmatpush2.bf16.msra.mxu0 0
  %125 = vmatprep.subr.bf16.mxu0 0
  %126 = vmatpush2.bf16.msra.mxu0 0
  %127 = vmatprep.subr.bf16.mxu0 0
  %128 = vmatpush2.bf16.msra.mxu0 0
  %129 = vmatprep.subr.bf16.mxu0 0
  %130 = vmatpush2.bf16.msra.mxu0 0
  %131 = vmatprep.mubr.bf16.mxu0 0
  %132 = vmatmul.mubr.bf16.gmra.mxu0 %v97
  %v133 = vpop.f32.mrf.mxu0
  %v134 = vadd.f32 0.0, %v133
  %v135 = vpop.f32.mrf.mxu0
  %v136 = vadd.f32 0.0, %v135
  %v137 = vpop.f32.mrf.mxu0
  %v138 = vpop.f32.mrf.mxu0
  %139 = vdwg.mxu0
  %140 = vmatprep.subr.bf16.mxu0 0
  %141 = vmatpush1.bf16.msra.mxu0 0
  %142 = vmatprep.subr.bf16.mxu0 0
  %143 = vmatpush1.bf16.msra.mxu0 0
  %144 = vmatprep.subr.bf16.mxu0 0
  %145 = vmatpush1.bf16.msra.mxu0 0
  %146 = vmatprep.subr.bf16.mxu0 0
  %147 = vmatpush1.bf16.msra.mxu0 0
  %148 = vmatprep.subr.bf16.mxu0 0
  %149 = vmatpush1.bf16.msra.mxu0 0
  %150 = vmatprep.subr.bf16.mxu0 0
  %151 = vmatpush1.bf16.msra.mxu0 0
  %152 = vmatprep.subr.bf16.mxu0 %v80
  %153 = vmatpush1.bf16.msra.mxu0 %v79
  %154 = vmatprep.subr.bf16.mxu0 %v74
  %155 = vmatpush1.bf16.msra.mxu0 %v73
  %156 = vmatprep.subr.bf16.mxu0 0
  %157 = vmatpush2.bf16.msra.mxu0 0
  %158 = vmatprep.subr.bf16.mxu0 0
  %159 = vmatpush2.bf16.msra.mxu0 0
  %160 = vmatprep.subr.bf16.mxu0 0
  %161 = vmatpush2.bf16.msra.mxu0 0
  %162 = vmatprep.subr.bf16.mxu0 0
  %163 = vmatpush2.bf16.msra.mxu0 0
  %164 = vmatprep.subr.bf16.mxu0 0
  %165 = vmatpush2.bf16.msra.mxu0 0
  %166 = vmatprep.subr.bf16.mxu0 0
  %167 = vmatpush2.bf16.msra.mxu0 0
  %168 = vmatprep.subr.bf16.mxu0 0
  %169 = vmatpush2.bf16.msra.mxu0 0
  %170 = vmatprep.subr.bf16.mxu0 0
  %171 = vmatpush2.bf16.msra.mxu0 0
  %172 = vmatprep.mubr.bf16.mxu0 0
  %173 = vmatmul.mubr.bf16.gmra.mxu0 %v97
  %v174 = vpop.f32.mrf.mxu0
  %v175 = vadd.f32 0.0, %v174
  %v176 = vpop.f32.mrf.mxu0
  %v177 = vadd.f32 0.0, %v176
  %v178 = vpop.f32.mrf.mxu0
  %v179 = vpop.f32.mrf.mxu0
  %180 = vdwg.mxu0
  %181 = vmatprep.subr.bf16.mxu0 0
  %182 = vmatpush1.bf16.msra.mxu0 0
  %183 = vmatprep.subr.bf16.mxu0 0
  %184 = vmatpush1.bf16.msra.mxu0 0
  %185 = vmatprep.subr.bf16.mxu0 0
  %186 = vmatpush1.bf16.msra.mxu0 0
  %187 = vmatprep.subr.bf16.mxu0 0
  %188 = vmatpush1.bf16.msra.mxu0 0
  %189 = vmatprep.subr.bf16.mxu0 0
  %190 = vmatpush1.bf16.msra.mxu0 0
  %191 = vmatprep.subr.bf16.mxu0 0
  %192 = vmatpush1.bf16.msra.mxu0 0
  %193 = vmatprep.subr.bf16.mxu0 %v82
  %194 = vmatpush1.bf16.msra.mxu0 %v81
  %195 = vmatprep.subr.bf16.mxu0 %v76
  %196 = vmatpush1.bf16.msra.mxu0 %v75
  %197 = vmatprep.subr.bf16.mxu0 0
  %198 = vmatpush2.bf16.msra.mxu0 0
  %199 = vmatprep.subr.bf16.mxu0 0
  %200 = vmatpush2.bf16.msra.mxu0 0
  %201 = vmatprep.subr.bf16.mxu0 0
  %202 = vmatpush2.bf16.msra.mxu0 0
  %203 = vmatprep.subr.bf16.mxu0 0
  %204 = vmatpush2.bf16.msra.mxu0 0
  %205 = vmatprep.subr.bf16.mxu0 0
  %206 = vmatpush2.bf16.msra.mxu0 0
  %207 = vmatprep.subr.bf16.mxu0 0
  %208 = vmatpush2.bf16.msra.mxu0 0
  %209 = vmatprep.subr.bf16.mxu0 0
  %210 = vmatpush2.bf16.msra.mxu0 0
  %211 = vmatprep.subr.bf16.mxu0 0
  %212 = vmatpush2.bf16.msra.mxu0 0
  %213 = vmatprep.mubr.bf16.mxu0 0
  %214 = vmatmul.mubr.bf16.gmra.mxu0 %v97
  %v215 = vpop.f32.mrf.mxu0
  %v216 = vadd.f32 0.0, %v215
  %v217 = vpop.f32.mrf.mxu0
  %v218 = vadd.f32 0.0, %v217
  %v219 = vpop.f32.mrf.mxu0
  %v220 = vpop.f32.mrf.mxu0
  %221 = vdwg.mxu0
  %222 = vst [vmem:[%s2] sm:$0xff] %v134
  %223 = vst [vmem:[%s2 + $0x8] sm:$0xff] %v136
  %224 = vst [vmem:[%s2 + $0x10] sm:$0xff] %v175
  %225 = vst [vmem:[%s2 + $0x18] sm:$0xff] %v177
  %226 = vst [vmem:[%s2 + $0x20] sm:$0xff] %v216
  %227 = vst [vmem:[%s2 + $0x28] sm:$0xff] %v218
  %v228 = vld [vmem:[%s3] sm:$0xff]
  %v229 = vadd.f32 %v134, %v136
  %v230 = vadd.f32 %v229, %v175
  %v231 = vadd.f32 %v230, %v177
  %v232 = vadd.f32 %v231, %v216
  %v233 = vadd.f32 %v232, %v218
  %234 = vadd.xlane.f32.xlu0 %v233
  %v235 = vpop.xlane.xlu0 %234
  %v236 = vadd.f32 %v228, %v235
  %vm237 = vcmask 7168
  %238 = vst.msk [vmem:[%s3] sm:$0xff] %vm237, %v236
  %v239 = vld [vmem:[%s4] sm:$0xff]
  %v240 = vmul.f32 %v134, %v134
  %v241 = vmul.f32 %v136, %v136
  %v242 = vmul.f32 %v175, %v175
  %v243 = vmul.f32 %v177, %v177
  %v244 = vmul.f32 %v216, %v216
  %v245 = vmul.f32 %v218, %v218
  %v246 = vadd.f32 %v240, %v241
  %v247 = vadd.f32 %v246, %v242
  %v248 = vadd.f32 %v247, %v243
  %v249 = vadd.f32 %v248, %v244
  %v250 = vadd.f32 %v249, %v245
  %251 = vadd.xlane.f32.xlu0 %v250
  %v252 = vpop.xlane.xlu0 %251
  %v253 = vadd.f32 %v239, %v252
  %254 = vst.msk [vmem:[%s4] sm:$0xff] %vm237, %v253
  // Predicated region
  $region14: #{conv_transpose_net.23} parent=0 // pred_check
    _
  $region15: #{conv_transpose_net.23} parent=0 // pred_check_branch
    %256 = sbr.rel (0) target = $region17
  $region16: #{conv_transpose_net.23} parent=0 // pred_region
    _
  $region17: #{conv_transpose_net.23} parent=0 // pred_fallthru
    _
  // Predicated region
  $region18: #{conv_transpose_net.23} parent=0 // pred_check
    _
  $region19: #{conv_transpose_net.23} parent=0 // pred_check_branch
    %258 = sbr.rel (0) target = $region21
  $region20: #{conv_transpose_net.23} parent=0 // pred_region
    _
  $region21: #{conv_transpose_net.23} parent=0 // pred_fallthru
    _
  // Predicated region
  $region22: #{conv_transpose_net.23} parent=0 // pred_check
    _
  $region23: #{conv_transpose_net.23} parent=0 // pred_check_branch
    %260 = sbr.rel (0) target = $region25
  $region24: #{conv_transpose_net.23} parent=0 // pred_region
    _
  $region25: #{conv_transpose_net.23} parent=0 // pred_fallthru
    _
  // Predicated region
  $region26: #{conv_transpose_net.23} parent=0 // pred_check
    _
  $region27: #{conv_transpose_net.23} parent=0 // pred_check_branch
    %262 = sbr.rel (0) target = $region29
  $region28: #{conv_transpose_net.23} parent=0 // pred_region
    _
  $region29: #{conv_transpose_net.23} parent=0 // pred_fallthru
    _
  // Predicated region
  $region30: #{conv_transpose_net.23} parent=0 // pred_check
    _
  $region31: #{conv_transpose_net.23} parent=0 // pred_check_branch
    %264 = sbr.rel (0) target = $region33
  $region32: #{conv_transpose_net.23} parent=0 // pred_region
    _
  $region33: #{conv_transpose_net.23} parent=0 // pred_fallthru
    _
  // Predicated region
  $region34: #{conv_transpose_net.23} parent=0 // pred_check
    _
  $region35: #{conv_transpose_net.23} parent=0 // pred_check_branch
    %266 = sbr.rel (0) target = $region37
  $region36: #{conv_transpose_net.23} parent=0 // pred_region
    _
  $region37: #{conv_transpose_net.23} parent=0 // pred_fallthru
    _

// kernel: conv_transpose_net.22
$region0: #{conv_transpose_net.22}
  #allocation0 [shape = 'u32[]', space=smem, size = 0x4, offset = 0x4, fixed_abs, tag = 'smem constant byte address 0x4 - core index']
  #allocation1 [shape = 'u32[144,128]{1,0:T(1,128)}', space=vmem, size = 0x12000, scoped, tag = 'internal scratch']
  %s0 = inlined_call_operand.vmem [shape: bf16[8,16], index: 0, kind: input, shape index: {}]
  %s1 = inlined_call_operand.vmem [shape: bf16[16,896], index: 1, kind: input, shape index: {}]
  %s2 = inlined_call_operand.vmem [shape: f32[8,896], index: 2, kind: output, shape index: {0}]
  %s3 = inlined_call_operand.vmem [shape: f32[8,1], index: 3, kind: output, shape index: {1}]
  %s4 = inlined_call_operand.vmem [shape: f32[8,1], index: 4, kind: output, shape index: {2}]
  %5 = xla_tuple %s2, %s3, %s4
  %s6 = sld [smem:[#allocation0]]
  $region38: #{conv_transpose_net.22} parent=0
    _
  %s8 = ssub.s32 1, %s6
  %s9 = scalar_select 0, %s8, %s6
  // Predicated region
  $region2: #{conv_transpose_net.22} parent=0 // pred_check
    _
  $region3: #{conv_transpose_net.22} parent=0 // pred_check_branch
    %11 = sbr.rel (0) target = $region5
  $region4: #{conv_transpose_net.22} parent=0 // pred_region
    _
  $region5: #{conv_transpose_net.22} parent=0 // pred_fallthru
    _
  // Predicated region
  $region6: #{conv_transpose_net.22} parent=0 // pred_check
    _
  $region7: #{conv_transpose_net.22} parent=0 // pred_check_branch
    %13 = sbr.rel (0) target = $region9
  $region8: #{conv_transpose_net.22} parent=0 // pred_region
    _
  $region9: #{conv_transpose_net.22} parent=0 // pred_fallthru
    _
  %p15 = scmp.eq.s32.totalorder 0, 0
  // Predicated region
  $region10: #{conv_transpose_net.22} parent=0 // pred_check
    %p16 = pneg %p15
  $region11: #{conv_transpose_net.22} parent=0 // pred_check_branch
    %18 = sbr.rel (%p16) target = $region13
  $region12: #{conv_transpose_net.22} parent=0 // pred_region
    %vm19 = vcmask 7168
    %20 = vst.msk [vmem:[%s3] sm:$0xff] %vm19, 0.0
    %21 = vst.msk [vmem:[%s4] sm:$0xff] %vm19, 0.0
  $region13: #{conv_transpose_net.22} parent=0 // pred_fallthru
    _
  %v22 = vld [vmem:[%s0] sm:$0xf]
  %v23 = vld [vmem:[%s1] sm:$0xff]
  %v24 = vld [vmem:[%s1 + $0x8] sm:$0xff]
  %v25 = vld [vmem:[%s1 + $0x10] sm:$0xff]
  %v26 = vld [vmem:[%s1 + $0x18] sm:$0xf]
  %v27 = vld [vmem:[%s1 + $0x1c] sm:$0xff]
  %v28 = vld [vmem:[%s1 + $0x24] sm:$0xff]
  %v29 = vld [vmem:[%s1 + $0x2c] sm:$0xff]
  %v30 = vld [vmem:[%s1 + $0x34] sm:$0xf]
  %v39 = vunpack.c.l.b16 %v23
  %v40 = vunpack.c.h.b16 %v23
  %v41 = vunpack.c.l.b16 %v24
  %v42 = vunpack.c.h.b16 %v24
  %v43 = vunpack.c.l.b16 %v25
  %v44 = vunpack.c.h.b16 %v25
  %v45 = vunpack.c.l.b16 %v26
  %v46 = vunpack.c.l.b16 %v27
  %v47 = vunpack.c.h.b16 %v27
  %v48 = vunpack.c.l.b16 %v28
  %v49 = vunpack.c.h.b16 %v28
  %v50 = vunpack.c.l.b16 %v29
  %v51 = vunpack.c.h.b16 %v29
  %v52 = vunpack.c.l.b16 %v30
  %v53 = vpack.c.b16 %v46, %v39
  %v54 = vpack.c.b16 %v47, %v40
  %v55 = vpack.c.b16 %v48, %v41
  %v56 = vpack.c.b16 %v49, %v42
  %v57 = vpack.c.b16 %v50, %v43
  %v58 = vpack.c.b16 %v51, %v44
  %v59 = vpack.c.b16 %v52, %v45
  %vm67 = vcmask 130048
  %v69 = vsel %vm67, %v22, 0
  %71 = vmatprep.subr.bf16.mxu0 0
  %72 = vmatpush1.bf16.msra.mxu0 0
  %73 = vmatprep.subr.bf16.mxu0 0
  %74 = vmatpush1.bf16.msra.mxu0 0
  %75 = vmatprep.subr.bf16.mxu0 0
  %76 = vmatpush1.bf16.msra.mxu0 0
  %77 = vmatprep.subr.bf16.mxu0 0
  %78 = vmatpush1.bf16.msra.mxu0 0
  %79 = vmatprep.subr.bf16.mxu0 0
  %80 = vmatpush1.bf16.msra.mxu0 0
  %81 = vmatprep.subr.bf16.mxu0 0
  %82 = vmatpush1.bf16.msra.mxu0 0
  %83 = vmatprep.subr.bf16.mxu0 0
  %84 = vmatpush1.bf16.msra.mxu0 0
  %85 = vmatprep.subr.bf16.mxu0 %v54
  %86 = vmatpush1.bf16.msra.mxu0 %v53
  %87 = vmatprep.subr.bf16.mxu0 0
  %88 = vmatpush2.bf16.msra.mxu0 0
  %89 = vmatprep.subr.bf16.mxu0 0
  %90 = vmatpush2.bf16.msra.mxu0 0
  %91 = vmatprep.subr.bf16.mxu0 0
  %92 = vmatpush2.bf16.msra.mxu0 0
  %93 = vmatprep.subr.bf16.mxu0 0
  %94 = vmatpush2.bf16.msra.mxu0 0
  %95 = vmatprep.subr.bf16.mxu0 0
  %96 = vmatpush2.bf16.msra.mxu0 0
  %97 = vmatprep.subr.bf16.mxu0 0
  %98 = vmatpush2.bf16.msra.mxu0 0
  %99 = vmatprep.subr.bf16.mxu0 0
  %100 = vmatpush2.bf16.msra.mxu0 0
  %101 = vmatprep.subr.bf16.mxu0 0
  %102 = vmatpush2.bf16.msra.mxu0 0
  %103 = vmatprep.mubr.bf16.mxu0 0
  %104 = vmatmul.mubr.bf16.gmra.mxu0 %v69
  %v105 = vpop.f32.mrf.mxu0
  %v106 = vadd.f32 0.0, %v105
  %v107 = vpop.f32.mrf.mxu0
  %v108 = vadd.f32 0.0, %v107
  %v109 = vpop.f32.mrf.mxu0
  %v110 = vpop.f32.mrf.mxu0
  %111 = vdwg.mxu0
  %112 = vmatprep.subr.bf16.mxu0 0
  %113 = vmatpush1.bf16.msra.mxu0 0
  %114 = vmatprep.subr.bf16.mxu0 0
  %115 = vmatpush1.bf16.msra.mxu0 0
  %116 = vmatprep.subr.bf16.mxu0 0
  %117 = vmatpush1.bf16.msra.mxu0 0
  %118 = vmatprep.subr.bf16.mxu0 0
  %119 = vmatpush1.bf16.msra.mxu0 0
  %120 = vmatprep.subr.bf16.mxu0 0
  %121 = vmatpush1.bf16.msra.mxu0 0
  %122 = vmatprep.subr.bf16.mxu0 0
  %123 = vmatpush1.bf16.msra.mxu0 0
  %124 = vmatprep.subr.bf16.mxu0 0
  %125 = vmatpush1.bf16.msra.mxu0 0
  %126 = vmatprep.subr.bf16.mxu0 %v56
  %127 = vmatpush1.bf16.msra.mxu0 %v55
  %128 = vmatprep.subr.bf16.mxu0 0
  %129 = vmatpush2.bf16.msra.mxu0 0
  %130 = vmatprep.subr.bf16.mxu0 0
  %131 = vmatpush2.bf16.msra.mxu0 0
  %132 = vmatprep.subr.bf16.mxu0 0
  %133 = vmatpush2.bf16.msra.mxu0 0
  %134 = vmatprep.subr.bf16.mxu0 0
  %135 = vmatpush2.bf16.msra.mxu0 0
  %136 = vmatprep.subr.bf16.mxu0 0
  %137 = vmatpush2.bf16.msra.mxu0 0
  %138 = vmatprep.subr.bf16.mxu0 0
  %139 = vmatpush2.bf16.msra.mxu0 0
  %140 = vmatprep.subr.bf16.mxu0 0
  %141 = vmatpush2.bf16.msra.mxu0 0
  %142 = vmatprep.subr.bf16.mxu0 0
  %143 = vmatpush2.bf16.msra.mxu0 0
  %144 = vmatprep.mubr.bf16.mxu0 0
  %145 = vmatmul.mubr.bf16.gmra.mxu0 %v69
  %v146 = vpop.f32.mrf.mxu0
  %v147 = vadd.f32 0.0, %v146
  %v148 = vpop.f32.mrf.mxu0
  %v149 = vadd.f32 0.0, %v148
  %v150 = vpop.f32.mrf.mxu0
  %v151 = vpop.f32.mrf.mxu0
  %152 = vdwg.mxu0
  %153 = vmatprep.subr.bf16.mxu0 0
  %154 = vmatpush1.bf16.msra.mxu0 0
  %155 = vmatprep.subr.bf16.mxu0 0
  %156 = vmatpush1.bf16.msra.mxu0 0
  %157 = vmatprep.subr.bf16.mxu0 0
  %158 = vmatpush1.bf16.msra.mxu0 0
  %159 = vmatprep.subr.bf16.mxu0 0
  %160 = vmatpush1.bf16.msra.mxu0 0
  %161 = vmatprep.subr.bf16.mxu0 0
  %162 = vmatpush1.bf16.msra.mxu0 0
  %163 = vmatprep.subr.bf16.mxu0 0
  %164 = vmatpush1.bf16.msra.mxu0 0
  %165 = vmatprep.subr.bf16.mxu0 0
  %166 = vmatpush1.bf16.msra.mxu0 0
  %167 = vmatprep.subr.bf16.mxu0 %v58
  %168 = vmatpush1.bf16.msra.mxu0 %v57
  %169 = vmatprep.subr.bf16.mxu0 0
  %170 = vmatpush2.bf16.msra.mxu0 0
  %171 = vmatprep.subr.bf16.mxu0 0
  %172 = vmatpush2.bf16.msra.mxu0 0
  %173 = vmatprep.subr.bf16.mxu0 0
  %174 = vmatpush2.bf16.msra.mxu0 0
  %175 = vmatprep.subr.bf16.mxu0 0
  %176 = vmatpush2.bf16.msra.mxu0 0
  %177 = vmatprep.subr.bf16.mxu0 0
  %178 = vmatpush2.bf16.msra.mxu0 0
  %179 = vmatprep.subr.bf16.mxu0 0
  %180 = vmatpush2.bf16.msra.mxu0 0
  %181 = vmatprep.subr.bf16.mxu0 0
  %182 = vmatpush2.bf16.msra.mxu0 0
  %183 = vmatprep.subr.bf16.mxu0 0
  %184 = vmatpush2.bf16.msra.mxu0 0
  %185 = vmatprep.mubr.bf16.mxu0 0
  %186 = vmatmul.mubr.bf16.gmra.mxu0 %v69
  %v187 = vpop.f32.mrf.mxu0
  %v188 = vadd.f32 0.0, %v187
  %v189 = vpop.f32.mrf.mxu0
  %v190 = vadd.f32 0.0, %v189
  %v191 = vpop.f32.mrf.mxu0
  %v192 = vpop.f32.mrf.mxu0
  %193 = vdwg.mxu0
  %194 = vmatprep.subr.bf16.mxu0 0
  %195 = vmatpush1.bf16.msra.mxu0 0
  %196 = vmatprep.subr.bf16.mxu0 0
  %197 = vmatpush1.bf16.msra.mxu0 0
  %198 = vmatprep.subr.bf16.mxu0 0
  %199 = vmatpush1.bf16.msra.mxu0 0
  %200 = vmatprep.subr.bf16.mxu0 0
  %201 = vmatpush1.bf16.msra.mxu0 0
  %202 = vmatprep.subr.bf16.mxu0 0
  %203 = vmatpush1.bf16.msra.mxu0 0
  %204 = vmatprep.subr.bf16.mxu0 0
  %205 = vmatpush1.bf16.msra.mxu0 0
  %206 = vmatprep.subr.bf16.mxu0 0
  %207 = vmatpush1.bf16.msra.mxu0 0
  %208 = vmatprep.subr.bf16.mxu0 0
  %209 = vmatpush1.bf16.msra.mxu0 %v59
  %210 = vmatprep.subr.bf16.mxu0 0
  %211 = vmatpush2.bf16.msra.mxu0 0
  %212 = vmatprep.subr.bf16.mxu0 0
  %213 = vmatpush2.bf16.msra.mxu0 0
  %214 = vmatprep.subr.bf16.mxu0 0
  %215 = vmatpush2.bf16.msra.mxu0 0
  %216 = vmatprep.subr.bf16.mxu0 0
  %217 = vmatpush2.bf16.msra.mxu0 0
  %218 = vmatprep.subr.bf16.mxu0 0
  %219 = vmatpush2.bf16.msra.mxu0 0
  %220 = vmatprep.subr.bf16.mxu0 0
  %221 = vmatpush2.bf16.msra.mxu0 0
  %222 = vmatprep.subr.bf16.mxu0 0
  %223 = vmatpush2.bf16.msra.mxu0 0
  %224 = vmatprep.subr.bf16.mxu0 0
  %225 = vmatpush2.bf16.msra.mxu0 0
  %226 = vmatprep.mubr.bf16.mxu0 0
  %227 = vmatmul.mubr.bf16.gmra.mxu0 %v69
  %v228 = vpop.f32.mrf.mxu0
  %v229 = vadd.f32 0.0, %v228
  %v230 = vpop.f32.mrf.mxu0
  %v231 = vpop.f32.mrf.mxu0
  %v232 = vpop.f32.mrf.mxu0
  %233 = vdwg.mxu0
  %234 = vst [vmem:[%s2] sm:$0xff] %v106
  %235 = vst [vmem:[%s2 + $0x8] sm:$0xff] %v108
  %236 = vst [vmem:[%s2 + $0x10] sm:$0xff] %v147
  %237 = vst [vmem:[%s2 + $0x18] sm:$0xff] %v149
  %238 = vst [vmem:[%s2 + $0x20] sm:$0xff] %v188
  %239 = vst [vmem:[%s2 + $0x28] sm:$0xff] %v190
  %240 = vst [vmem:[%s2 + $0x30] sm:$0xff] %v229
  %v241 = vld [vmem:[%s3] sm:$0xff]
  %v242 = vadd.f32 %v106, %v108
  %v243 = vadd.f32 %v242, %v147
  %v244 = vadd.f32 %v243, %v149
  %v245 = vadd.f32 %v244, %v188
  %v246 = vadd.f32 %v245, %v190
  %v247 = vadd.f32 %v246, %v229
  %248 = vadd.xlane.f32.xlu0 %v247
  %v249 = vpop.xlane.xlu0 %248
  %v250 = vadd.f32 %v241, %v249
  %vm251 = vcmask 7168
  %252 = vst.msk [vmem:[%s3] sm:$0xff] %vm251, %v250
  %v253 = vld [vmem:[%s4] sm:$0xff]
  %v254 = vmul.f32 %v106, %v106
  %v255 = vmul.f32 %v108, %v108
  %v256 = vmul.f32 %v147, %v147
  %v257 = vmul.f32 %v149, %v149
  %v258 = vmul.f32 %v188, %v188
  %v259 = vmul.f32 %v190, %v190
  %v260 = vmul.f32 %v229, %v229
  %v261 = vadd.f32 %v254, %v255
  %v262 = vadd.f32 %v261, %v256
  %v263 = vadd.f32 %v262, %v257
  %v264 = vadd.f32 %v263, %v258
  %v265 = vadd.f32 %v264, %v259
  %v266 = vadd.f32 %v265, %v260
  %267 = vadd.xlane.f32.xlu0 %v266
  %v268 = vpop.xlane.xlu0 %267
  %v269 = vadd.f32 %v253, %v268
  %270 = vst.msk [vmem:[%s4] sm:$0xff] %vm251, %v269
  // Predicated region
  $region14: #{conv_transpose_net.22} parent=0 // pred_check
    _
  $region15: #{conv_transpose_net.22} parent=0 // pred_check_branch
    %272 = sbr.rel (0) target = $region17
  $region16: #{conv_transpose_net.22} parent=0 // pred_region
    _
  $region17: #{conv_transpose_net.22} parent=0 // pred_fallthru
    _
  // Predicated region
  $region18: #{conv_transpose_net.22} parent=0 // pred_check
    _
  $region19: #{conv_transpose_net.22} parent=0 // pred_check_branch
    %274 = sbr.rel (0) target = $region21
  $region20: #{conv_transpose_net.22} parent=0 // pred_region
    _
  $region21: #{conv_transpose_net.22} parent=0 // pred_fallthru
    _
  // Predicated region
  $region22: #{conv_transpose_net.22} parent=0 // pred_check
    _
  $region23: #{conv_transpose_net.22} parent=0 // pred_check_branch
    %276 = sbr.rel (0) target = $region25
  $region24: #{conv_transpose_net.22} parent=0 // pred_region
    _
  $region25: #{conv_transpose_net.22} parent=0 // pred_fallthru
    _
  // Predicated region
  $region26: #{conv_transpose_net.22} parent=0 // pred_check
    _
  $region27: #{conv_transpose_net.22} parent=0 // pred_check_branch
    %278 = sbr.rel (0) target = $region29
  $region28: #{conv_transpose_net.22} parent=0 // pred_region
    _
  $region29: #{conv_transpose_net.22} parent=0 // pred_fallthru
    _
  // Predicated region
  $region30: #{conv_transpose_net.22} parent=0 // pred_check
    _
  $region31: #{conv_transpose_net.22} parent=0 // pred_check_branch
    %280 = sbr.rel (0) target = $region33
  $region32: #{conv_transpose_net.22} parent=0 // pred_region
    _
  $region33: #{conv_transpose_net.22} parent=0 // pred_fallthru
    _
  // Predicated region
  $region34: #{conv_transpose_net.22} parent=0 // pred_check
    _
  $region35: #{conv_transpose_net.22} parent=0 // pred_check_branch
    %282 = sbr.rel (0) target = $region37
  $region36: #{conv_transpose_net.22} parent=0 // pred_region
    _
  $region37: #{conv_transpose_net.22} parent=0 // pred_fallthru
    _

// kernel: conv_transpose_net.20
$region0: #{conv_transpose_net.20}
  #allocation0 [shape = 'u32[]', space=smem, size = 0x4, offset = 0x4, fixed_abs, tag = 'smem constant byte address 0x4 - core index']
  #allocation1 [shape = 'u32[144,128]{1,0:T(1,128)}', space=vmem, size = 0x12000, scoped, tag = 'internal scratch']
  %s0 = inlined_call_operand.vmem [shape: bf16[8,8], index: 0, kind: input, shape index: {}]
  %s1 = inlined_call_operand.vmem [shape: bf16[8,896], index: 1, kind: input, shape index: {}]
  %s2 = inlined_call_operand.vmem [shape: f32[8,896], index: 2, kind: output, shape index: {0}]
  %s3 = inlined_call_operand.vmem [shape: f32[8,1], index: 3, kind: output, shape index: {1}]
  %s4 = inlined_call_operand.vmem [shape: f32[8,1], index: 4, kind: output, shape index: {2}]
  %5 = xla_tuple %s2, %s3, %s4
  %s6 = sld [smem:[#allocation0]]
  $region38: #{conv_transpose_net.20} parent=0
    _
  %s8 = ssub.s32 1, %s6
  %s9 = scalar_select 0, %s8, %s6
  // Predicated region
  $region2: #{conv_transpose_net.20} parent=0 // pred_check
    _
  $region3: #{conv_transpose_net.20} parent=0 // pred_check_branch
    %11 = sbr.rel (0) target = $region5
  $region4: #{conv_transpose_net.20} parent=0 // pred_region
    _
  $region5: #{conv_transpose_net.20} parent=0 // pred_fallthru
    _
  // Predicated region
  $region6: #{conv_transpose_net.20} parent=0 // pred_check
    _
  $region7: #{conv_transpose_net.20} parent=0 // pred_check_branch
    %13 = sbr.rel (0) target = $region9
  $region8: #{conv_transpose_net.20} parent=0 // pred_region
    _
  $region9: #{conv_transpose_net.20} parent=0 // pred_fallthru
    _
  %p15 = scmp.eq.s32.totalorder 0, 0
  // Predicated region
  $region10: #{conv_transpose_net.20} parent=0 // pred_check
    %p16 = pneg %p15
  $region11: #{conv_transpose_net.20} parent=0 // pred_check_branch
    %18 = sbr.rel (%p16) target = $region13
  $region12: #{conv_transpose_net.20} parent=0 // pred_region
    %vm19 = vcmask 7168
    %20 = vst.msk [vmem:[%s3] sm:$0xff] %vm19, 0.0
    %21 = vst.msk [vmem:[%s4] sm:$0xff] %vm19, 0.0
  $region13: #{conv_transpose_net.20} parent=0 // pred_fallthru
    _
  %v22 = vld [vmem:[%s0] sm:$0xf]
  %v23 = vld [vmem:[%s1] sm:$0xff]
  %v24 = vld [vmem:[%s1 + $0x8] sm:$0xff]
  %v25 = vld [vmem:[%s1 + $0x10] sm:$0xff]
  %v26 = vld [vmem:[%s1 + $0x18] sm:$0xf]
  %v31 = vunpack.c.l.b16 %v23
  %v32 = vunpack.c.h.b16 %v23
  %v33 = vunpack.c.l.b16 %v24
  %v34 = vunpack.c.h.b16 %v24
  %v35 = vunpack.c.l.b16 %v25
  %v36 = vunpack.c.h.b16 %v25
  %v37 = vunpack.c.l.b16 %v26
  %v38 = vpack.c.b16 %v31, %v31
  %v39 = vpack.c.b16 %v32, %v32
  %v40 = vpack.c.b16 %v33, %v33
  %v41 = vpack.c.b16 %v34, %v34
  %v42 = vpack.c.b16 %v35, %v35
  %v43 = vpack.c.b16 %v36, %v36
  %v44 = vpack.c.b16 %v37, %v37
  %vm45 = vcmask 64512
  %v47 = vsel %vm45, %v22, 0
  %vm49 = vcmask 1043456
  %v51 = vsel %vm49, %v38, 0
  %v54 = vsel %vm49, %v39, 0
  %v57 = vsel %vm49, %v40, 0
  %v60 = vsel %vm49, %v41, 0
  %v63 = vsel %vm49, %v42, 0
  %v66 = vsel %vm49, %v43, 0
  %v69 = vsel %vm49, %v44, 0
  %71 = vmatprep.subr.bf16.mxu0 0
  %72 = vmatpush1.bf16.msra.mxu0 0
  %73 = vmatprep.subr.bf16.mxu0 0
  %74 = vmatpush1.bf16.msra.mxu0 0
  %75 = vmatprep.subr.bf16.mxu0 0
  %76 = vmatpush1.bf16.msra.mxu0 0
  %77 = vmatprep.subr.bf16.mxu0 0
  %78 = vmatpush1.bf16.msra.mxu0 0
  %79 = vmatprep.subr.bf16.mxu0 0
  %80 = vmatpush1.bf16.msra.mxu0 0
  %81 = vmatprep.subr.bf16.mxu0 0
  %82 = vmatpush1.bf16.msra.mxu0 0
  %83 = vmatprep.subr.bf16.mxu0 0
  %84 = vmatpush1.bf16.msra.mxu0 0
  %85 = vmatprep.subr.bf16.mxu0 %v54
  %86 = vmatpush1.bf16.msra.mxu0 %v51
  %87 = vmatprep.subr.bf16.mxu0 0
  %88 = vmatpush2.bf16.msra.mxu0 0
  %89 = vmatprep.subr.bf16.mxu0 0
  %90 = vmatpush2.bf16.msra.mxu0 0
  %91 = vmatprep.subr.bf16.mxu0 0
  %92 = vmatpush2.bf16.msra.mxu0 0
  %93 = vmatprep.subr.bf16.mxu0 0
  %94 = vmatpush2.bf16.msra.mxu0 0
  %95 = vmatprep.subr.bf16.mxu0 0
  %96 = vmatpush2.bf16.msra.mxu0 0
  %97 = vmatprep.subr.bf16.mxu0 0
  %98 = vmatpush2.bf16.msra.mxu0 0
  %99 = vmatprep.subr.bf16.mxu0 0
  %100 = vmatpush2.bf16.msra.mxu0 0
  %101 = vmatprep.subr.bf16.mxu0 0
  %102 = vmatpush2.bf16.msra.mxu0 0
  %103 = vmatprep.mubr.bf16.mxu0 0
  %104 = vmatmul.mubr.bf16.gmra.mxu0 %v47
  %v105 = vpop.f32.mrf.mxu0
  %v106 = vadd.f32 0.0, %v105
  %v107 = vpop.f32.mrf.mxu0
  %v108 = vadd.f32 0.0, %v107
  %v109 = vpop.f32.mrf.mxu0
  %v110 = vpop.f32.mrf.mxu0
  %111 = vdwg.mxu0
  %112 = vmatprep.subr.bf16.mxu0 0
  %113 = vmatpush1.bf16.msra.mxu0 0
  %114 = vmatprep.subr.bf16.mxu0 0
  %115 = vmatpush1.bf16.msra.mxu0 0
  %116 = vmatprep.subr.bf16.mxu0 0
  %117 = vmatpush1.bf16.msra.mxu0 0
  %118 = vmatprep.subr.bf16.mxu0 0
  %119 = vmatpush1.bf16.msra.mxu0 0
  %120 = vmatprep.subr.bf16.mxu0 0
  %121 = vmatpush1.bf16.msra.mxu0 0
  %122 = vmatprep.subr.bf16.mxu0 0
  %123 = vmatpush1.bf16.msra.mxu0 0
  %124 = vmatprep.subr.bf16.mxu0 0
  %125 = vmatpush1.bf16.msra.mxu0 0
  %126 = vmatprep.subr.bf16.mxu0 %v60
  %127 = vmatpush1.bf16.msra.mxu0 %v57
  %128 = vmatprep.subr.bf16.mxu0 0
  %129 = vmatpush2.bf16.msra.mxu0 0
  %130 = vmatprep.subr.bf16.mxu0 0
  %131 = vmatpush2.bf16.msra.mxu0 0
  %132 = vmatprep.subr.bf16.mxu0 0
  %133 = vmatpush2.bf16.msra.mxu0 0
  %134 = vmatprep.subr.bf16.mxu0 0
  %135 = vmatpush2.bf16.msra.mxu0 0
  %136 = vmatprep.subr.bf16.mxu0 0
  %137 = vmatpush2.bf16.msra.mxu0 0
  %138 = vmatprep.subr.bf16.mxu0 0
  %139 = vmatpush2.bf16.msra.mxu0 0
  %140 = vmatprep.subr.bf16.mxu0 0
  %141 = vmatpush2.bf16.msra.mxu0 0
  %142 = vmatprep.subr.bf16.mxu0 0
  %143 = vmatpush2.bf16.msra.mxu0 0
  %144 = vmatprep.mubr.bf16.mxu0 0
  %145 = vmatmul.mubr.bf16.gmra.mxu0 %v47
  %v146 = vpop.f32.mrf.mxu0
  %v147 = vadd.f32 0.0, %v146
  %v148 = vpop.f32.mrf.mxu0
  %v149 = vadd.f32 0.0, %v148
  %v150 = vpop.f32.mrf.mxu0
  %v151 = vpop.f32.mrf.mxu0
  %152 = vdwg.mxu0
  %153 = vmatprep.subr.bf16.mxu0 0
  %154 = vmatpush1.bf16.msra.mxu0 0
  %155 = vmatprep.subr.bf16.mxu0 0
  %156 = vmatpush1.bf16.msra.mxu0 0
  %157 = vmatprep.subr.bf16.mxu0 0
  %158 = vmatpush1.bf16.msra.mxu0 0
  %159 = vmatprep.subr.bf16.mxu0 0
  %160 = vmatpush1.bf16.msra.mxu0 0
  %161 = vmatprep.subr.bf16.mxu0 0
  %162 = vmatpush1.bf16.msra.mxu0 0
  %163 = vmatprep.subr.bf16.mxu0 0
  %164 = vmatpush1.bf16.msra.mxu0 0
  %165 = vmatprep.subr.bf16.mxu0 0
  %166 = vmatpush1.bf16.msra.mxu0 0
  %167 = vmatprep.subr.bf16.mxu0 %v66
  %168 = vmatpush1.bf16.msra.mxu0 %v63
  %169 = vmatprep.subr.bf16.mxu0 0
  %170 = vmatpush2.bf16.msra.mxu0 0
  %171 = vmatprep.subr.bf16.mxu0 0
  %172 = vmatpush2.bf16.msra.mxu0 0
  %173 = vmatprep.subr.bf16.mxu0 0
  %174 = vmatpush2.bf16.msra.mxu0 0
  %175 = vmatprep.subr.bf16.mxu0 0
  %176 = vmatpush2.bf16.msra.mxu0 0
  %177 = vmatprep.subr.bf16.mxu0 0
  %178 = vmatpush2.bf16.msra.mxu0 0
  %179 = vmatprep.subr.bf16.mxu0 0
  %180 = vmatpush2.bf16.msra.mxu0 0
  %181 = vmatprep.subr.bf16.mxu0 0
  %182 = vmatpush2.bf16.msra.mxu0 0
  %183 = vmatprep.subr.bf16.mxu0 0
  %184 = vmatpush2.bf16.msra.mxu0 0
  %185 = vmatprep.mubr.bf16.mxu0 0
  %186 = vmatmul.mubr.bf16.gmra.mxu0 %v47
  %v187 = vpop.f32.mrf.mxu0
  %v188 = vadd.f32 0.0, %v187
  %v189 = vpop.f32.mrf.mxu0
  %v190 = vadd.f32 0.0, %v189
  %v191 = vpop.f32.mrf.mxu0
  %v192 = vpop.f32.mrf.mxu0
  %193 = vdwg.mxu0
  %194 = vmatprep.subr.bf16.mxu0 0
  %195 = vmatpush1.bf16.msra.mxu0 0
  %196 = vmatprep.subr.bf16.mxu0 0
  %197 = vmatpush1.bf16.msra.mxu0 0
  %198 = vmatprep.subr.bf16.mxu0 0
  %199 = vmatpush1.bf16.msra.mxu0 0
  %200 = vmatprep.subr.bf16.mxu0 0
  %201 = vmatpush1.bf16.msra.mxu0 0
  %202 = vmatprep.subr.bf16.mxu0 0
  %203 = vmatpush1.bf16.msra.mxu0 0
  %204 = vmatprep.subr.bf16.mxu0 0
  %205 = vmatpush1.bf16.msra.mxu0 0
  %206 = vmatprep.subr.bf16.mxu0 0
  %207 = vmatpush1.bf16.msra.mxu0 0
  %208 = vmatprep.subr.bf16.mxu0 0
  %209 = vmatpush1.bf16.msra.mxu0 %v69
  %210 = vmatprep.subr.bf16.mxu0 0
  %211 = vmatpush2.bf16.msra.mxu0 0
  %212 = vmatprep.subr.bf16.mxu0 0
  %213 = vmatpush2.bf16.msra.mxu0 0
  %214 = vmatprep.subr.bf16.mxu0 0
  %215 = vmatpush2.bf16.msra.mxu0 0
  %216 = vmatprep.subr.bf16.mxu0 0
  %217 = vmatpush2.bf16.msra.mxu0 0
  %218 = vmatprep.subr.bf16.mxu0 0
  %219 = vmatpush2.bf16.msra.mxu0 0
  %220 = vmatprep.subr.bf16.mxu0 0
  %221 = vmatpush2.bf16.msra.mxu0 0
  %222 = vmatprep.subr.bf16.mxu0 0
  %223 = vmatpush2.bf16.msra.mxu0 0
  %224 = vmatprep.subr.bf16.mxu0 0
  %225 = vmatpush2.bf16.msra.mxu0 0
  %226 = vmatprep.mubr.bf16.mxu0 0
  %227 = vmatmul.mubr.bf16.gmra.mxu0 %v47
  %v228 = vpop.f32.mrf.mxu0
  %v229 = vadd.f32 0.0, %v228
  %v230 = vpop.f32.mrf.mxu0
  %v231 = vpop.f32.mrf.mxu0
  %v232 = vpop.f32.mrf.mxu0
  %233 = vdwg.mxu0
  %234 = vst [vmem:[%s2] sm:$0xff] %v106
  %235 = vst [vmem:[%s2 + $0x8] sm:$0xff] %v108
  %236 = vst [vmem:[%s2 + $0x10] sm:$0xff] %v147
  %237 = vst [vmem:[%s2 + $0x18] sm:$0xff] %v149
  %238 = vst [vmem:[%s2 + $0x20] sm:$0xff] %v188
  %239 = vst [vmem:[%s2 + $0x28] sm:$0xff] %v190
  %240 = vst [vmem:[%s2 + $0x30] sm:$0xff] %v229
  %v241 = vld [vmem:[%s3] sm:$0xff]
  %v242 = vadd.f32 %v106, %v108
  %v243 = vadd.f32 %v242, %v147
  %v244 = vadd.f32 %v243, %v149
  %v245 = vadd.f32 %v244, %v188
  %v246 = vadd.f32 %v245, %v190
  %v247 = vadd.f32 %v246, %v229
  %248 = vadd.xlane.f32.xlu0 %v247
  %v249 = vpop.xlane.xlu0 %248
  %v250 = vadd.f32 %v241, %v249
  %vm251 = vcmask 7168
  %252 = vst.msk [vmem:[%s3] sm:$0xff] %vm251, %v250
  %v253 = vld [vmem:[%s4] sm:$0xff]
  %v254 = vmul.f32 %v106, %v106
  %v255 = vmul.f32 %v108, %v108
  %v256 = vmul.f32 %v147, %v147
  %v257 = vmul.f32 %v149, %v149
  %v258 = vmul.f32 %v188, %v188
  %v259 = vmul.f32 %v190, %v190
  %v260 = vmul.f32 %v229, %v229
  %v261 = vadd.f32 %v254, %v255
  %v262 = vadd.f32 %v261, %v256
  %v263 = vadd.f32 %v262, %v257
  %v264 = vadd.f32 %v263, %v258
  %v265 = vadd.f32 %v264, %v259
  %v266 = vadd.f32 %v265, %v260
  %267 = vadd.xlane.f32.xlu0 %v266
  %v268 = vpop.xlane.xlu0 %267
  %v269 = vadd.f32 %v253, %v268
  %270 = vst.msk [vmem:[%s4] sm:$0xff] %vm251, %v269
  // Predicated region
  $region14: #{conv_transpose_net.20} parent=0 // pred_check
    _
  $region15: #{conv_transpose_net.20} parent=0 // pred_check_branch
    %272 = sbr.rel (0) target = $region17
  $region16: #{conv_transpose_net.20} parent=0 // pred_region
    _
  $region17: #{conv_transpose_net.20} parent=0 // pred_fallthru
    _
  // Predicated region
  $region18: #{conv_transpose_net.20} parent=0 // pred_check
    _
  $region19: #{conv_transpose_net.20} parent=0 // pred_check_branch
    %274 = sbr.rel (0) target = $region21
  $region20: #{conv_transpose_net.20} parent=0 // pred_region
    _
  $region21: #{conv_transpose_net.20} parent=0 // pred_fallthru
    _
  // Predicated region
  $region22: #{conv_transpose_net.20} parent=0 // pred_check
    _
  $region23: #{conv_transpose_net.20} parent=0 // pred_check_branch
    %276 = sbr.rel (0) target = $region25
  $region24: #{conv_transpose_net.20} parent=0 // pred_region
    _
  $region25: #{conv_transpose_net.20} parent=0 // pred_fallthru
    _
  // Predicated region
  $region26: #{conv_transpose_net.20} parent=0 // pred_check
    _
  $region27: #{conv_transpose_net.20} parent=0 // pred_check_branch
    %278 = sbr.rel (0) target = $region29
  $region28: #{conv_transpose_net.20} parent=0 // pred_region
    _
  $region29: #{conv_transpose_net.20} parent=0 // pred_fallthru
    _
  // Predicated region
  $region30: #{conv_transpose_net.20} parent=0 // pred_check
    _
  $region31: #{conv_transpose_net.20} parent=0 // pred_check_branch
    %280 = sbr.rel (0) target = $region33
  $region32: #{conv_transpose_net.20} parent=0 // pred_region
    _
  $region33: #{conv_transpose_net.20} parent=0 // pred_fallthru
    _
  // Predicated region
  $region34: #{conv_transpose_net.20} parent=0 // pred_check
    _
  $region35: #{conv_transpose_net.20} parent=0 // pred_check_branch
    %282 = sbr.rel (0) target = $region37
  $region36: #{conv_transpose_net.20} parent=0 // pred_region
    _
  $region37: #{conv_transpose_net.20} parent=0 // pred_fallthru
    _

// kernel: conv_transpose_net.24
$region0: #{conv_transpose_net.24}
  #allocation0 [shape = 'u32[]', space=smem, size = 0x4, offset = 0x4, fixed_abs, tag = 'smem constant byte address 0x4 - core index']
  #allocation1 [shape = 'u32[144,128]{1,0:T(1,128)}', space=vmem, size = 0x12000, scoped, tag = 'internal scratch']
  %s0 = inlined_call_operand.vmem [shape: f32[8,1024], index: 0, kind: input, shape index: {}]
  %s1 = inlined_call_operand.vmem [shape: f32[8,1], index: 1, kind: input, shape index: {}]
  %s2 = inlined_call_operand.vmem [shape: f32[8,1], index: 2, kind: input, shape index: {}]
  %s3 = inlined_call_operand.vmem [shape: f32[8,1024], index: 3, kind: output, shape index: {}]
  %s4 = sld [smem:[#allocation0]]
  $region22: #{conv_transpose_net.24} parent=0
    _
  %s6 = ssub.s32 1, %s4
  %s7 = scalar_select 0, %s6, %s4
  // Predicated region
  $region2: #{conv_transpose_net.24} parent=0 // pred_check
    _
  $region3: #{conv_transpose_net.24} parent=0 // pred_check_branch
    %9 = sbr.rel (0) target = $region5
  $region4: #{conv_transpose_net.24} parent=0 // pred_region
    _
  $region5: #{conv_transpose_net.24} parent=0 // pred_fallthru
    _
  // Predicated region
  $region6: #{conv_transpose_net.24} parent=0 // pred_check
    _
  $region7: #{conv_transpose_net.24} parent=0 // pred_check_branch
    %11 = sbr.rel (0) target = $region9
  $region8: #{conv_transpose_net.24} parent=0 // pred_region
    _
  $region9: #{conv_transpose_net.24} parent=0 // pred_fallthru
    _
  // Predicated region
  $region10: #{conv_transpose_net.24} parent=0 // pred_check
    _
  $region11: #{conv_transpose_net.24} parent=0 // pred_check_branch
    %13 = sbr.rel (0) target = $region13
  $region12: #{conv_transpose_net.24} parent=0 // pred_region
    _
  $region13: #{conv_transpose_net.24} parent=0 // pred_fallthru
    _
  %v14 = vld [vmem:[%s0] sm:$0xff]
  %v15 = vld [vmem:[%s0 + $0x8] sm:$0xff]
  %v16 = vld [vmem:[%s0 + $0x10] sm:$0xff]
  %v17 = vld [vmem:[%s0 + $0x18] sm:$0xff]
  %v18 = vld [vmem:[%s0 + $0x20] sm:$0xff]
  %v19 = vld [vmem:[%s0 + $0x28] sm:$0xff]
  %v20 = vld [vmem:[%s0 + $0x30] sm:$0xff]
  %v21 = vld [vmem:[%s0 + $0x38] sm:$0xff]
  %v22 = vld [vmem:[%s1] sm:$0xff]
  %24 = vset.pattern.permute.xlu0 0
  %25 = vperm.xlu0 %24, %v22
  %v26 = vpop.permute.xlu0 %25
  %v28 = vmul.f32 %v14, %v26
  %v29 = vmul.f32 %v15, %v26
  %v30 = vmul.f32 %v16, %v26
  %v31 = vmul.f32 %v17, %v26
  %v32 = vmul.f32 %v18, %v26
  %v33 = vmul.f32 %v19, %v26
  %v34 = vmul.f32 %v20, %v26
  %v35 = vmul.f32 %v21, %v26
  %v36 = vld [vmem:[%s2] sm:$0xff]
  %38 = vset.pattern.permute.xlu0 0
  %39 = vperm.xlu0 %38, %v36
  %v40 = vpop.permute.xlu0 %39
  %v42 = vadd.f32 %v28, %v40
  %v43 = vadd.f32 %v29, %v40
  %v44 = vadd.f32 %v30, %v40
  %v45 = vadd.f32 %v31, %v40
  %v46 = vadd.f32 %v32, %v40
  %v47 = vadd.f32 %v33, %v40
  %v48 = vadd.f32 %v34, %v40
  %v49 = vadd.f32 %v35, %v40
  %vm50 = vcmp.ge.f32.partialorder %v42, 0.0
  %vm51 = vcmp.ge.f32.partialorder %v43, 0.0
  %vm52 = vcmp.ge.f32.partialorder %v44, 0.0
  %vm53 = vcmp.ge.f32.partialorder %v45, 0.0
  %vm54 = vcmp.ge.f32.partialorder %v46, 0.0
  %vm55 = vcmp.ge.f32.partialorder %v47, 0.0
  %vm56 = vcmp.ge.f32.partialorder %v48, 0.0
  %vm57 = vcmp.ge.f32.partialorder %v49, 0.0
  %v58 = vmul.f32 %v42, 0.1
  %v59 = vmul.f32 %v43, 0.1
  %v60 = vmul.f32 %v44, 0.1
  %v61 = vmul.f32 %v45, 0.1
  %v62 = vmul.f32 %v46, 0.1
  %v63 = vmul.f32 %v47, 0.1
  %v64 = vmul.f32 %v48, 0.1
  %v65 = vmul.f32 %v49, 0.1
  %v66 = vsel %vm50, %v42, %v58
  %v67 = vsel %vm51, %v43, %v59
  %v68 = vsel %vm52, %v44, %v60
  %v69 = vsel %vm53, %v45, %v61
  %v70 = vsel %vm54, %v46, %v62
  %v71 = vsel %vm55, %v47, %v63
  %v72 = vsel %vm56, %v48, %v64
  %v73 = vsel %vm57, %v49, %v65
  %74 = vst [vmem:[%s3] sm:$0xff] %v66
  %75 = vst [vmem:[%s3 + $0x8] sm:$0xff] %v67
  %76 = vst [vmem:[%s3 + $0x10] sm:$0xff] %v68
  %77 = vst [vmem:[%s3 + $0x18] sm:$0xff] %v69
  %78 = vst [vmem:[%s3 + $0x20] sm:$0xff] %v70
  %79 = vst [vmem:[%s3 + $0x28] sm:$0xff] %v71
  %80 = vst [vmem:[%s3 + $0x30] sm:$0xff] %v72
  %81 = vst [vmem:[%s3 + $0x38] sm:$0xff] %v73
  // Predicated region
  $region14: #{conv_transpose_net.24} parent=0 // pred_check
    _
  $region15: #{conv_transpose_net.24} parent=0 // pred_check_branch
    %83 = sbr.rel (0) target = $region17
  $region16: #{conv_transpose_net.24} parent=0 // pred_region
    _
  $region17: #{conv_transpose_net.24} parent=0 // pred_fallthru
    _
  // Predicated region
  $region18: #{conv_transpose_net.24} parent=0 // pred_check
    _
  $region19: #{conv_transpose_net.24} parent=0 // pred_check_branch
    %85 = sbr.rel (0) target = $region21
  $region20: #{conv_transpose_net.24} parent=0 // pred_region
    _
  $region21: #{conv_transpose_net.24} parent=0 // pred_fallthru
    _

// kernel: conv_transpose_net.25
$region0: #{conv_transpose_net.25}
  #allocation0 [shape = 'u32[]', space=smem, size = 0x4, offset = 0x4, fixed_abs, tag = 'smem constant byte address 0x4 - core index']
  #allocation1 [shape = 'u32[144,128]{1,0:T(1,128)}', space=vmem, size = 0x12000, scoped, tag = 'internal scratch']
  %s0 = inlined_call_operand.vmem [shape: f32[8,896], index: 0, kind: input, shape index: {}]
  %s1 = inlined_call_operand.vmem [shape: f32[8,1], index: 1, kind: input, shape index: {}]
  %s2 = inlined_call_operand.vmem [shape: f32[8,1], index: 2, kind: input, shape index: {}]
  %s3 = inlined_call_operand.vmem [shape: f32[8,896], index: 3, kind: output, shape index: {}]
  %s4 = sld [smem:[#allocation0]]
  $region22: #{conv_transpose_net.25} parent=0
    _
  %s6 = ssub.s32 1, %s4
  %s7 = scalar_select 0, %s6, %s4
  // Predicated region
  $region2: #{conv_transpose_net.25} parent=0 // pred_check
    _
  $region3: #{conv_transpose_net.25} parent=0 // pred_check_branch
    %9 = sbr.rel (0) target = $region5
  $region4: #{conv_transpose_net.25} parent=0 // pred_region
    _
  $region5: #{conv_transpose_net.25} parent=0 // pred_fallthru
    _
  // Predicated region
  $region6: #{conv_transpose_net.25} parent=0 // pred_check
    _
  $region7: #{conv_transpose_net.25} parent=0 // pred_check_branch
    %11 = sbr.rel (0) target = $region9
  $region8: #{conv_transpose_net.25} parent=0 // pred_region
    _
  $region9: #{conv_transpose_net.25} parent=0 // pred_fallthru
    _
  // Predicated region
  $region10: #{conv_transpose_net.25} parent=0 // pred_check
    _
  $region11: #{conv_transpose_net.25} parent=0 // pred_check_branch
    %13 = sbr.rel (0) target = $region13
  $region12: #{conv_transpose_net.25} parent=0 // pred_region
    _
  $region13: #{conv_transpose_net.25} parent=0 // pred_fallthru
    _
  %v14 = vld [vmem:[%s0] sm:$0xff]
  %v15 = vld [vmem:[%s0 + $0x8] sm:$0xff]
  %v16 = vld [vmem:[%s0 + $0x10] sm:$0xff]
  %v17 = vld [vmem:[%s0 + $0x18] sm:$0xff]
  %v18 = vld [vmem:[%s0 + $0x20] sm:$0xff]
  %v19 = vld [vmem:[%s0 + $0x28] sm:$0xff]
  %v20 = vld [vmem:[%s0 + $0x30] sm:$0xff]
  %v21 = vld [vmem:[%s1] sm:$0xff]
  %23 = vset.pattern.permute.xlu0 0
  %24 = vperm.xlu0 %23, %v21
  %v25 = vpop.permute.xlu0 %24
  %v27 = vmul.f32 %v14, %v25
  %v28 = vmul.f32 %v15, %v25
  %v29 = vmul.f32 %v16, %v25
  %v30 = vmul.f32 %v17, %v25
  %v31 = vmul.f32 %v18, %v25
  %v32 = vmul.f32 %v19, %v25
  %v33 = vmul.f32 %v20, %v25
  %v34 = vld [vmem:[%s2] sm:$0xff]
  %36 = vset.pattern.permute.xlu0 0
  %37 = vperm.xlu0 %36, %v34
  %v38 = vpop.permute.xlu0 %37
  %v40 = vadd.f32 %v27, %v38
  %v41 = vadd.f32 %v28, %v38
  %v42 = vadd.f32 %v29, %v38
  %v43 = vadd.f32 %v30, %v38
  %v44 = vadd.f32 %v31, %v38
  %v45 = vadd.f32 %v32, %v38
  %v46 = vadd.f32 %v33, %v38
  %vm47 = vcmp.ge.f32.partialorder %v40, 0.0
  %vm48 = vcmp.ge.f32.partialorder %v41, 0.0
  %vm49 = vcmp.ge.f32.partialorder %v42, 0.0
  %vm50 = vcmp.ge.f32.partialorder %v43, 0.0
  %vm51 = vcmp.ge.f32.partialorder %v44, 0.0
  %vm52 = vcmp.ge.f32.partialorder %v45, 0.0
  %vm53 = vcmp.ge.f32.partialorder %v46, 0.0
  %v54 = vmul.f32 %v40, 0.1
  %v55 = vmul.f32 %v41, 0.1
  %v56 = vmul.f32 %v42, 0.1
  %v57 = vmul.f32 %v43, 0.1
  %v58 = vmul.f32 %v44, 0.1
  %v59 = vmul.f32 %v45, 0.1
  %v60 = vmul.f32 %v46, 0.1
  %v61 = vsel %vm47, %v40, %v54
  %v62 = vsel %vm48, %v41, %v55
  %v63 = vsel %vm49, %v42, %v56
  %v64 = vsel %vm50, %v43, %v57
  %v65 = vsel %vm51, %v44, %v58
  %v66 = vsel %vm52, %v45, %v59
  %v67 = vsel %vm53, %v46, %v60
  %68 = vst [vmem:[%s3] sm:$0xff] %v61
  %69 = vst [vmem:[%s3 + $0x8] sm:$0xff] %v62
  %70 = vst [vmem:[%s3 + $0x10] sm:$0xff] %v63
  %71 = vst [vmem:[%s3 + $0x18] sm:$0xff] %v64
  %72 = vst [vmem:[%s3 + $0x20] sm:$0xff] %v65
  %73 = vst [vmem:[%s3 + $0x28] sm:$0xff] %v66
  %74 = vst [vmem:[%s3 + $0x30] sm:$0xff] %v67
  // Predicated region
  $region14: #{conv_transpose_net.25} parent=0 // pred_check
    _
  $region15: #{conv_transpose_net.25} parent=0 // pred_check_branch
    %76 = sbr.rel (0) target = $region17
  $region16: #{conv_transpose_net.25} parent=0 // pred_region
    _
  $region17: #{conv_transpose_net.25} parent=0 // pred_fallthru
    _
  // Predicated region
  $region18: #{conv_transpose_net.25} parent=0 // pred_check
    _
  $region19: #{conv_transpose_net.25} parent=0 // pred_check_branch
    %78 = sbr.rel (0) target = $region21
  $region20: #{conv_transpose_net.25} parent=0 // pred_region
    _
  $region21: #{conv_transpose_net.25} parent=0 // pred_fallthru
    _

// kernel: conv_transpose_net.31
$region0: #{conv_transpose_net.31}
  #allocation0 [shape = 'u32[]', space=smem, size = 0x4, offset = 0x4, fixed_abs, tag = 'smem constant byte address 0x4 - core index']
  #allocation1 [shape = 'u32[144,128]{1,0:T(1,128)}', space=vmem, size = 0x12000, scoped, tag = 'internal scratch']
  %s0 = inlined_call_operand.vmem [shape: f32[8,768], index: 0, kind: input, shape index: {}]
  %s1 = inlined_call_operand.vmem [shape: f32[8,1], index: 1, kind: input, shape index: {}]
  %s2 = inlined_call_operand.vmem [shape: f32[8,1], index: 2, kind: input, shape index: {}]
  %s3 = inlined_call_operand.vmem [shape: f32[8,768], index: 3, kind: output, shape index: {}]
  %s4 = sld [smem:[#allocation0]]
  $region22: #{conv_transpose_net.31} parent=0
    _
  %s6 = ssub.s32 1, %s4
  %s7 = scalar_select 0, %s6, %s4
  // Predicated region
  $region2: #{conv_transpose_net.31} parent=0 // pred_check
    _
  $region3: #{conv_transpose_net.31} parent=0 // pred_check_branch
    %9 = sbr.rel (0) target = $region5
  $region4: #{conv_transpose_net.31} parent=0 // pred_region
    _
  $region5: #{conv_transpose_net.31} parent=0 // pred_fallthru
    _
  // Predicated region
  $region6: #{conv_transpose_net.31} parent=0 // pred_check
    _
  $region7: #{conv_transpose_net.31} parent=0 // pred_check_branch
    %11 = sbr.rel (0) target = $region9
  $region8: #{conv_transpose_net.31} parent=0 // pred_region
    _
  $region9: #{conv_transpose_net.31} parent=0 // pred_fallthru
    _
  // Predicated region
  $region10: #{conv_transpose_net.31} parent=0 // pred_check
    _
  $region11: #{conv_transpose_net.31} parent=0 // pred_check_branch
    %13 = sbr.rel (0) target = $region13
  $region12: #{conv_transpose_net.31} parent=0 // pred_region
    _
  $region13: #{conv_transpose_net.31} parent=0 // pred_fallthru
    _
  %v14 = vld [vmem:[%s0] sm:$0xff]
  %v15 = vld [vmem:[%s0 + $0x8] sm:$0xff]
  %v16 = vld [vmem:[%s0 + $0x10] sm:$0xff]
  %v17 = vld [vmem:[%s0 + $0x18] sm:$0xff]
  %v18 = vld [vmem:[%s0 + $0x20] sm:$0xff]
  %v19 = vld [vmem:[%s0 + $0x28] sm:$0xff]
  %v20 = vld [vmem:[%s1] sm:$0xff]
  %22 = vset.pattern.permute.xlu0 0
  %23 = vperm.xlu0 %22, %v20
  %v24 = vpop.permute.xlu0 %23
  %v26 = vmul.f32 %v14, %v24
  %v27 = vmul.f32 %v15, %v24
  %v28 = vmul.f32 %v16, %v24
  %v29 = vmul.f32 %v17, %v24
  %v30 = vmul.f32 %v18, %v24
  %v31 = vmul.f32 %v19, %v24
  %v32 = vld [vmem:[%s2] sm:$0xff]
  %34 = vset.pattern.permute.xlu0 0
  %35 = vperm.xlu0 %34, %v32
  %v36 = vpop.permute.xlu0 %35
  %v38 = vadd.f32 %v26, %v36
  %v39 = vadd.f32 %v27, %v36
  %v40 = vadd.f32 %v28, %v36
  %v41 = vadd.f32 %v29, %v36
  %v42 = vadd.f32 %v30, %v36
  %v43 = vadd.f32 %v31, %v36
  %vm44 = vcmp.ge.f32.partialorder %v38, 0.0
  %vm45 = vcmp.ge.f32.partialorder %v39, 0.0
  %vm46 = vcmp.ge.f32.partialorder %v40, 0.0
  %vm47 = vcmp.ge.f32.partialorder %v41, 0.0
  %vm48 = vcmp.ge.f32.partialorder %v42, 0.0
  %vm49 = vcmp.ge.f32.partialorder %v43, 0.0
  %v50 = vmul.f32 %v38, 0.1
  %v51 = vmul.f32 %v39, 0.1
  %v52 = vmul.f32 %v40, 0.1
  %v53 = vmul.f32 %v41, 0.1
  %v54 = vmul.f32 %v42, 0.1
  %v55 = vmul.f32 %v43, 0.1
  %v56 = vsel %vm44, %v38, %v50
  %v57 = vsel %vm45, %v39, %v51
  %v58 = vsel %vm46, %v40, %v52
  %v59 = vsel %vm47, %v41, %v53
  %v60 = vsel %vm48, %v42, %v54
  %v61 = vsel %vm49, %v43, %v55
  %62 = vst [vmem:[%s3] sm:$0xff] %v56
  %63 = vst [vmem:[%s3 + $0x8] sm:$0xff] %v57
  %64 = vst [vmem:[%s3 + $0x10] sm:$0xff] %v58
  %65 = vst [vmem:[%s3 + $0x18] sm:$0xff] %v59
  %66 = vst [vmem:[%s3 + $0x20] sm:$0xff] %v60
  %67 = vst [vmem:[%s3 + $0x28] sm:$0xff] %v61
  // Predicated region
  $region14: #{conv_transpose_net.31} parent=0 // pred_check
    _
  $region15: #{conv_transpose_net.31} parent=0 // pred_check_branch
    %69 = sbr.rel (0) target = $region17
  $region16: #{conv_transpose_net.31} parent=0 // pred_region
    _
  $region17: #{conv_transpose_net.31} parent=0 // pred_fallthru
    _
  // Predicated region
  $region18: #{conv_transpose_net.31} parent=0 // pred_check
    _
  $region19: #{conv_transpose_net.31} parent=0 // pred_check_branch
    %71 = sbr.rel (0) target = $region21
  $region20: #{conv_transpose_net.31} parent=0 // pred_region
    _
  $region21: #{conv_transpose_net.31} parent=0 // pred_fallthru
    _

</llo_original>
